<compile_context>
chip_gen: v6e
topology: v6e:2x2x1
jax: 0.10.0
libtpu: 0.0.40
codegen_flags: <defaults>
</compile_context>

<pallas_src>
import math
import functools

import jax
import jax.numpy as jnp
from jax.experimental import pallas as pl
from jax.experimental.pallas import tpu as pltpu

LANE = 128  # TPU lane width; small trailing dims are padded to this.


# ---------------------------------------------------------------------------
# Pallas kernel: single grid step processes the whole (small) batch.
# ---------------------------------------------------------------------------
def _sentiment_kernel(
    x_ref,      # (B, S, D)      f32  token embeddings (PE not yet added)
    pe_ref,     # (S, D)         f32  positional encoding
    w_ref,      # (5, 128, 128)  bf16 [Wqkv | Wo | W1 | W2 | Wff], zero-padded
    vec_ref,    # (16, 128)      f32  [bqkv,bo,g1,be1,b1,b2,g2,be2,bff,...]
    out_ref,    # (B, 128)       f32  lane-dense logits (first C cols real)
    *, num_heads, d_model, d_ff, seq_len, batch,
):
    H, D, F, S, B = num_heads, d_model, d_ff, seq_len, batch
    Dh = D // H
    N = B * S          # rows for all row-wise (linear / LN) work
    G = H * B          # folded (head, batch) attention batch dim
    QKV = 3 * D
    wdt = w_ref.dtype  # bf16 (MXU-native); activations stay f32

    # --- unpack bias / layernorm vectors (static lane slices) ---------------
    vecs = vec_ref[...]                       # (16, 128) f32
    b_qkv = vecs[0:1, :QKV]                   # (1, 3D)  q part pre-scaled
    bo    = vecs[1:2, :D]
    g1    = vecs[2:3, :D]
    be1   = vecs[3:4, :D]
    b1    = vecs[4:5, :F]
    b2    = vecs[5:6, :D]
    g2    = vecs[6:7, :D]
    be2   = vecs[7:8, :D]
    bff   = vecs[8:9, :]                      # (1, 128)

    # --- unpack weight slab --------------------------------------------------
    w_qkv = w_ref[0][:D, :QKV]                # (D, 3D) bf16, q pre-scaled
    w_o   = w_ref[1][:D, :D]                  # (D, D)
    w_1   = w_ref[2][:D, :F]                  # (D, F)
    w_2   = w_ref[3][:F, :D]                  # (F, D)
    w_ff  = w_ref[4][:D, :]                   # (D, 128)

    def layernorm(z, g, b):
        mu = jnp.mean(z, axis=-1, keepdims=True)
        var = jnp.mean((z - mu) ** 2, axis=-1, keepdims=True)
        return (z - mu) * jax.lax.rsqrt(var + 1e-5) * g + b

    # --- embeddings + positional encoding (added in-kernel) ------------------
    x3 = x_ref[...] + pe_ref[...][None, :, :]           # (B, S, D) f32
    xf = x3.reshape(N, D)                                # (N, D)

    # --- fused lane-dense Q/K/V projection: one matmul -----------------------
    qkv = jnp.dot(xf.astype(wdt), w_qkv,
                  preferred_element_type=jnp.float32) + b_qkv      # (N, 3D)

    # split q/k/v + heads with static lane slices; fold (head, batch) batch dim
    def fold_heads(off):
        pieces = [qkv[:, off + h * Dh: off + (h + 1) * Dh] for h in range(H)]
        z = jnp.stack(pieces, axis=0)                    # (H, N, Dh)
        return z.reshape(H, B, S, Dh).reshape(G, S, Dh)  # (G, S, Dh)

    q = fold_heads(0)
    k = fold_heads(D)
    v = fold_heads(2 * D)

    # --- attention: all heads & batch in two batched contractions ------------
    s = jnp.einsum("gqd,gkd->gqk", q.astype(wdt), k.astype(wdt),
                   preferred_element_type=jnp.float32)   # (G, S, S)
    s = s - jnp.max(s, axis=-1, keepdims=True)
    p = jnp.exp(s)
    p = p / jnp.sum(p, axis=-1, keepdims=True)           # exact softmax
    ctx = jnp.einsum("gqk,gkd->gqd", p.astype(wdt), v.astype(wdt),
                     preferred_element_type=jnp.float32)  # (G, S, Dh)

    # lane-concat heads back to (N, D) and do ONE dense output projection.
    ctx4 = ctx.reshape(H, B, S, Dh)
    ctx_cat = jnp.concatenate([ctx4[h] for h in range(H)], axis=-1)  # (B,S,D)
    attn = jnp.dot(ctx_cat.reshape(N, D).astype(wdt), w_o,
                   preferred_element_type=jnp.float32) + bo          # (N, D)

    # --- residual + layernorm 1 ----------------------------------------------
    y1 = layernorm(xf + attn, g1, be1)                    # (N, D)

    # --- feed-forward ---------------------------------------------------------
    ff = jnp.dot(y1.astype(wdt), w_1, preferred_element_type=jnp.float32) + b1
    ff = jnp.maximum(ff, 0.0)                             # ReLU
    ff = jnp.dot(ff.astype(wdt), w_2, preferred_element_type=jnp.float32) + b2

    # --- residual + layernorm 2 ----------------------------------------------
    y2 = layernorm(y1 + ff, g2, be2)                      # (N, D)

    # --- mean pool over sequence + classifier head (lane-dense output) ------
    pooled = jnp.mean(y2.reshape(B, S, D), axis=1)        # (B, D)
    out_ref[...] = jnp.dot(pooled.astype(wdt), w_ff,
                           preferred_element_type=jnp.float32) + bff  # (B,128)


# ---------------------------------------------------------------------------
# Wrapper-side packing (done once) and forward pass
# ---------------------------------------------------------------------------
def _positional_encoding(seq_len, d_model):
    pos = jnp.arange(seq_len, dtype=jnp.float32)[:, None]
    div = jnp.exp(jnp.arange(0, d_model, 2, dtype=jnp.float32)
                  * (-math.log(10000.0) / d_model))
    pe = jnp.zeros((seq_len, d_model), dtype=jnp.float32)
    pe = pe.at[:, 0::2].set(jnp.sin(pos * div))
    pe = pe.at[:, 1::2].set(jnp.cos(pos * div))
    return pe


def pack_params(params, *, d_model, d_ff, num_heads, max_seq_len,
                weight_dtype=jnp.bfloat16):
    """One-time repack of raw tensors into 2 lane-friendly slabs so the kernel
    needs only 4 operands total (x, pe, weight slab, vector slab)."""
    D, F, H = d_model, d_ff, num_heads
    Dh = D // H
    C = params["wff"].shape[1]
    assert D % H == 0 and 3 * D <= LANE and F <= LANE and C <= LANE
    scale = 1.0 / math.sqrt(Dh)       # folded into Q weights/bias (free)

    w_slab = jnp.zeros((5, LANE, LANE), jnp.float32)
    w_slab = w_slab.at[0, :D, 0:D].set(params["wq"] * scale)
    w_slab = w_slab.at[0, :D, D:2 * D].set(params["wk"])
    w_slab = w_slab.at[0, :D, 2 * D:3 * D].set(params["wv"])
    w_slab = w_slab.at[1, :D, :D].set(params["wo"])
    w_slab = w_slab.at[2, :D, :F].set(params["w1"])
    w_slab = w_slab.at[3, :F, :D].set(params["w2"])
    w_slab = w_slab.at[4, :D, :C].set(params["wff"])
    w_slab = w_slab.astype(weight_dtype)

    def lane_pad(v):
        v = v.reshape(-1)
        return jnp.pad(v, (0, LANE - v.shape[0]))

    b_qkv = jnp.concatenate([params["bq"].reshape(-1) * scale,
                             params["bk"].reshape(-1),
                             params["bv"].reshape(-1)])
    rows = jnp.stack(
        [lane_pad(b_qkv), lane_pad(params["bo"]), lane_pad(params["g1"]),
         lane_pad(params["be1"]), lane_pad(params["b1"]), lane_pad(params["b2"]),
         lane_pad(params["g2"]), lane_pad(params["be2"]), lane_pad(params["bff"])],
        axis=0)                                            # (9, 128)
    vecs = jnp.zeros((16, LANE), jnp.float32).at[:9].set(rows)

    return {
        "emb": params["embedding"].astype(jnp.float32),
        "pe": _positional_encoding(max_seq_len, d_model),   # hoisted
        "w_slab": w_slab,
        "vecs": vecs,
        "num_out": C,
    }


def sentiment_forward(tokens, packed, *, d_model, d_ff, num_heads):
    """tokens: (B, S) int32 ids.  Returns (B, num_classes-1) f32 logits."""
    B, S = tokens.shape
    D = d_model

    # TODO(synk): embedding gather kept in plain JAX (data-dependent gather);
    # an in-kernel DMA/scalar-prefetch gather would remove one HBM round trip.
    x = packed["emb"][tokens]                               # (B, S, D) f32
    pe = packed["pe"][:S]                                   # (S, D)

    kernel = functools.partial(
        _sentiment_kernel, num_heads=num_heads, d_model=D, d_ff=d_ff,
        seq_len=S, batch=B)

    # Single grid step: whole problem fits easily in VMEM; one step on the
    # serial-grid single-TC chips (v5e/v6e) and avoids per-step overhead on v7x.
    out = pl.pallas_call(
        kernel,
        out_shape=jax.ShapeDtypeStruct((B, LANE), jnp.float32),
        grid_spec=pltpu.PrefetchScalarGridSpec(
            num_scalar_prefetch=0,
            grid=(1,),
            in_specs=[
                pl.BlockSpec((B, S, D), lambda i: (0, 0, 0)),       # x
                pl.BlockSpec((S, D), lambda i: (0, 0)),             # pe
                pl.BlockSpec((5, LANE, LANE), lambda i: (0, 0, 0)), # w_slab
                pl.BlockSpec((16, LANE), lambda i: (0, 0)),         # vecs
            ],
            out_specs=pl.BlockSpec((B, LANE), lambda i: (0, 0)),
        ),
        compiler_params=pltpu.CompilerParams(
            dimension_semantics=("arbitrary",),
            vmem_limit_bytes=32 * 1024 * 1024),
    )(x, pe, packed["w_slab"], packed["vecs"])

    return out[:, :packed["num_out"]]                        # (B, C)


# ---------------------------------------------------------------------------
# Deterministic parameter init (synthetic; no checkpoints)
# ---------------------------------------------------------------------------
def init_params(key, *, vocab_size, d_model, d_ff, num_classes):
    keys = jax.random.split(key, 8)
    s = 0.02
    D, F, C = d_model, d_ff, num_classes - 1   # nn.Linear(d_model, num_classes-1)
    return {
        "embedding": jax.random.normal(keys[0], (vocab_size, D), jnp.float32) * s,
        "wq": jax.random.normal(keys[1], (D, D), jnp.float32) * s,
        "wk": jax.random.normal(keys[2], (D, D), jnp.float32) * s,
        "wv": jax.random.normal(keys[3], (D, D), jnp.float32) * s,
        "wo": jax.random.normal(keys[4], (D, D), jnp.float32) * s,
        "w1": jax.random.normal(keys[5], (D, F), jnp.float32) * s,
        "w2": jax.random.normal(keys[6], (F, D), jnp.float32) * s,
        "wff": jax.random.normal(keys[7], (D, C), jnp.float32) * s,
        "bq": jnp.zeros((1, D), jnp.float32),
        "bk": jnp.zeros((1, D), jnp.float32),
        "bv": jnp.zeros((1, D), jnp.float32),
        "bo": jnp.zeros((1, D), jnp.float32),
        "b1": jnp.zeros((1, F), jnp.float32),
        "b2": jnp.zeros((1, D), jnp.float32),
        "bff": jnp.zeros((1, C), jnp.float32),
        "g1": jnp.ones((1, D), jnp.float32),
        "be1": jnp.zeros((1, D), jnp.float32),
        "g2": jnp.ones((1, D), jnp.float32),
        "be2": jnp.zeros((1, D), jnp.float32),
    }


if __name__ == "__main__":
    # Small shapes consistent with the module's forward.
    B, S = 2, 8
    d_model, d_ff, num_heads = 32, 64, 4
    max_seq_len, num_classes, vocab_size = 8, 3, 50

    key = jax.random.PRNGKey(0)
    pkey, tkey = jax.random.split(key)
    params = init_params(pkey, vocab_size=vocab_size, d_model=d_model,
                         d_ff=d_ff, num_classes=num_classes)
    packed = pack_params(params, d_model=d_model, d_ff=d_ff,
                         num_heads=num_heads, max_seq_len=max_seq_len)
    tokens = jax.random.randint(tkey, (B, S), 0, vocab_size, dtype=jnp.int32)

    logits = sentiment_forward(tokens, packed, d_model=d_model, d_ff=d_ff,
                               num_heads=num_heads)
    jax.block_until_ready(logits)
    assert logits.shape == (B, num_classes - 1)
    print("KERNEL_OK")
</pallas_src>

<mosaic_0001>
module attributes {stable_mosaic.version = 11 : i64} {
  func.func @_sentiment_kernel(%arg0: i32, %arg1: memref<2x8x32xf32, #tpu.memory_space<vmem>>, %arg2: memref<8x32xf32, #tpu.memory_space<vmem>>, %arg3: memref<5x128x128xbf16, #tpu.memory_space<vmem>>, %arg4: memref<16x128xf32, #tpu.memory_space<vmem>>, %arg5: memref<2x128xf32, #tpu.memory_space<vmem>>) attributes {dimension_semantics = [#tpu.dimension_semantics<arbitrary>], iteration_bounds = array<i64: 1>, scalar_prefetch = 0 : i64, scratch_operands = 0 : i64, tpu.core_type = #tpu.core_type<tc>, window_params = [{pipeline_mode = #tpu.pipeline_mode<synchronous>, transform_indices = @transform_0, window_bounds = array<i64: 2, 8, 32>}, {pipeline_mode = #tpu.pipeline_mode<synchronous>, transform_indices = @transform_1, window_bounds = array<i64: 8, 32>}, {pipeline_mode = #tpu.pipeline_mode<synchronous>, transform_indices = @transform_2, window_bounds = array<i64: 5, 128, 128>}, {pipeline_mode = #tpu.pipeline_mode<synchronous>, transform_indices = @transform_3, window_bounds = array<i64: 16, 128>}, {pipeline_mode = #tpu.pipeline_mode<synchronous>, transform_indices = @transform_4, window_bounds = array<i64: 2, 128>}]} {
    %c0 = arith.constant 0 : index
    %c0_0 = arith.constant 0 : index
    %0 = vector.load %arg4[%c0, %c0_0] : memref<16x128xf32, #tpu.memory_space<vmem>>, vector<16x128xf32>
    %1 = vector.extract_strided_slice %0 {offsets = [0, 0], sizes = [1, 96], strides = [1, 1]} : vector<16x128xf32> to vector<1x96xf32>
    %2 = vector.extract_strided_slice %0 {offsets = [1, 0], sizes = [1, 32], strides = [1, 1]} : vector<16x128xf32> to vector<1x32xf32>
    %3 = vector.extract_strided_slice %0 {offsets = [2, 0], sizes = [1, 32], strides = [1, 1]} : vector<16x128xf32> to vector<1x32xf32>
    %4 = vector.extract_strided_slice %0 {offsets = [3, 0], sizes = [1, 32], strides = [1, 1]} : vector<16x128xf32> to vector<1x32xf32>
    %5 = vector.extract_strided_slice %0 {offsets = [4, 0], sizes = [1, 64], strides = [1, 1]} : vector<16x128xf32> to vector<1x64xf32>
    %6 = vector.extract_strided_slice %0 {offsets = [5, 0], sizes = [1, 32], strides = [1, 1]} : vector<16x128xf32> to vector<1x32xf32>
    %7 = vector.extract_strided_slice %0 {offsets = [6, 0], sizes = [1, 32], strides = [1, 1]} : vector<16x128xf32> to vector<1x32xf32>
    %8 = vector.extract_strided_slice %0 {offsets = [7, 0], sizes = [1, 32], strides = [1, 1]} : vector<16x128xf32> to vector<1x32xf32>
    %9 = vector.extract_strided_slice %0 {offsets = [8, 0], sizes = [1, 128], strides = [1, 1]} : vector<16x128xf32> to vector<1x128xf32>
    %c0_1 = arith.constant 0 : index
    %c0_2 = arith.constant 0 : index
    %c0_3 = arith.constant 0 : index
    %10 = vector.load %arg3[%c0_1, %c0_2, %c0_3] : memref<5x128x128xbf16, #tpu.memory_space<vmem>>, vector<1x128x128xbf16>
    %11 = vector.shape_cast %10 : vector<1x128x128xbf16> to vector<128x128xbf16>
    %12 = vector.extract_strided_slice %11 {offsets = [0, 0], sizes = [32, 96], strides = [1, 1]} : vector<128x128xbf16> to vector<32x96xbf16>
    %c1 = arith.constant 1 : index
    %c0_4 = arith.constant 0 : index
    %c0_5 = arith.constant 0 : index
    %13 = vector.load %arg3[%c1, %c0_4, %c0_5] : memref<5x128x128xbf16, #tpu.memory_space<vmem>>, vector<1x128x128xbf16>
    %14 = vector.shape_cast %13 : vector<1x128x128xbf16> to vector<128x128xbf16>
    %15 = vector.extract_strided_slice %14 {offsets = [0, 0], sizes = [32, 32], strides = [1, 1]} : vector<128x128xbf16> to vector<32x32xbf16>
    %c2 = arith.constant 2 : index
    %c0_6 = arith.constant 0 : index
    %c0_7 = arith.constant 0 : index
    %16 = vector.load %arg3[%c2, %c0_6, %c0_7] : memref<5x128x128xbf16, #tpu.memory_space<vmem>>, vector<1x128x128xbf16>
    %17 = vector.shape_cast %16 : vector<1x128x128xbf16> to vector<128x128xbf16>
    %18 = vector.extract_strided_slice %17 {offsets = [0, 0], sizes = [32, 64], strides = [1, 1]} : vector<128x128xbf16> to vector<32x64xbf16>
    %c3 = arith.constant 3 : index
    %c0_8 = arith.constant 0 : index
    %c0_9 = arith.constant 0 : index
    %19 = vector.load %arg3[%c3, %c0_8, %c0_9] : memref<5x128x128xbf16, #tpu.memory_space<vmem>>, vector<1x128x128xbf16>
    %20 = vector.shape_cast %19 : vector<1x128x128xbf16> to vector<128x128xbf16>
    %21 = vector.extract_strided_slice %20 {offsets = [0, 0], sizes = [64, 32], strides = [1, 1]} : vector<128x128xbf16> to vector<64x32xbf16>
    %c4 = arith.constant 4 : index
    %c0_10 = arith.constant 0 : index
    %c0_11 = arith.constant 0 : index
    %22 = vector.load %arg3[%c4, %c0_10, %c0_11] : memref<5x128x128xbf16, #tpu.memory_space<vmem>>, vector<1x128x128xbf16>
    %23 = vector.shape_cast %22 : vector<1x128x128xbf16> to vector<128x128xbf16>
    %24 = vector.extract_strided_slice %23 {offsets = [0, 0], sizes = [32, 128], strides = [1, 1]} : vector<128x128xbf16> to vector<32x128xbf16>
    %c0_12 = arith.constant 0 : index
    %c0_13 = arith.constant 0 : index
    %c0_14 = arith.constant 0 : index
    %25 = vector.load %arg1[%c0_12, %c0_13, %c0_14] : memref<2x8x32xf32, #tpu.memory_space<vmem>>, vector<2x8x32xf32>
    %c0_15 = arith.constant 0 : index
    %c0_16 = arith.constant 0 : index
    %26 = vector.load %arg2[%c0_15, %c0_16] : memref<8x32xf32, #tpu.memory_space<vmem>>, vector<8x32xf32>
    %27 = vector.shape_cast %26 : vector<8x32xf32> to vector<1x8x32xf32>
    %28 = vector.broadcast %27 : vector<1x8x32xf32> to vector<2x8x32xf32>
    %29 = arith.addf %25, %28 : vector<2x8x32xf32>
    %30 = vector.shape_cast %29 : vector<2x8x32xf32> to vector<16x32xf32>
    %31 = arith.truncf %30 : vector<16x32xf32> to vector<16x32xbf16>
    %cst = arith.constant dense<0.000000e+00> : vector<16x96xf32>
    %32 = tpu.matmul %31, %12, %cst {dimension_numbers = #tpu.dot_dimension_numbers<[1], [0], [0], [1], [0, 0, 1, 1], [], []>} : vector<16x32xbf16>, vector<32x96xbf16>, vector<16x96xf32> -> vector<16x96xf32>
    %33 = vector.broadcast %1 : vector<1x96xf32> to vector<16x96xf32>
    %34 = arith.addf %32, %33 : vector<16x96xf32>
    %35 = vector.extract_strided_slice %34 {offsets = [0, 0], sizes = [16, 8], strides = [1, 1]} : vector<16x96xf32> to vector<16x8xf32>
    %36 = vector.extract_strided_slice %34 {offsets = [0, 8], sizes = [16, 8], strides = [1, 1]} : vector<16x96xf32> to vector<16x8xf32>
    %37 = vector.extract_strided_slice %34 {offsets = [0, 16], sizes = [16, 8], strides = [1, 1]} : vector<16x96xf32> to vector<16x8xf32>
    %38 = vector.extract_strided_slice %34 {offsets = [0, 24], sizes = [16, 8], strides = [1, 1]} : vector<16x96xf32> to vector<16x8xf32>
    %39 = vector.shape_cast %35 : vector<16x8xf32> to vector<1x16x8xf32>
    %40 = vector.shape_cast %36 : vector<16x8xf32> to vector<1x16x8xf32>
    %41 = vector.shape_cast %37 : vector<16x8xf32> to vector<1x16x8xf32>
    %42 = vector.shape_cast %38 : vector<16x8xf32> to vector<1x16x8xf32>
    %43 = tpu.concatenate %39, %40, %41, %42 in 0 : vector<1x16x8xf32>, vector<1x16x8xf32>, vector<1x16x8xf32>, vector<1x16x8xf32> -> vector<4x16x8xf32>
    %44 = vector.shape_cast %43 : vector<4x16x8xf32> to vector<4x2x8x8xf32>
    %45 = vector.shape_cast %44 : vector<4x2x8x8xf32> to vector<8x8x8xf32>
    %46 = vector.extract_strided_slice %34 {offsets = [0, 32], sizes = [16, 8], strides = [1, 1]} : vector<16x96xf32> to vector<16x8xf32>
    %47 = vector.extract_strided_slice %34 {offsets = [0, 40], sizes = [16, 8], strides = [1, 1]} : vector<16x96xf32> to vector<16x8xf32>
    %48 = vector.extract_strided_slice %34 {offsets = [0, 48], sizes = [16, 8], strides = [1, 1]} : vector<16x96xf32> to vector<16x8xf32>
    %49 = vector.extract_strided_slice %34 {offsets = [0, 56], sizes = [16, 8], strides = [1, 1]} : vector<16x96xf32> to vector<16x8xf32>
    %50 = vector.shape_cast %46 : vector<16x8xf32> to vector<1x16x8xf32>
    %51 = vector.shape_cast %47 : vector<16x8xf32> to vector<1x16x8xf32>
    %52 = vector.shape_cast %48 : vector<16x8xf32> to vector<1x16x8xf32>
    %53 = vector.shape_cast %49 : vector<16x8xf32> to vector<1x16x8xf32>
    %54 = tpu.concatenate %50, %51, %52, %53 in 0 : vector<1x16x8xf32>, vector<1x16x8xf32>, vector<1x16x8xf32>, vector<1x16x8xf32> -> vector<4x16x8xf32>
    %55 = vector.shape_cast %54 : vector<4x16x8xf32> to vector<4x2x8x8xf32>
    %56 = vector.shape_cast %55 : vector<4x2x8x8xf32> to vector<8x8x8xf32>
    %57 = vector.extract_strided_slice %34 {offsets = [0, 64], sizes = [16, 8], strides = [1, 1]} : vector<16x96xf32> to vector<16x8xf32>
    %58 = vector.extract_strided_slice %34 {offsets = [0, 72], sizes = [16, 8], strides = [1, 1]} : vector<16x96xf32> to vector<16x8xf32>
    %59 = vector.extract_strided_slice %34 {offsets = [0, 80], sizes = [16, 8], strides = [1, 1]} : vector<16x96xf32> to vector<16x8xf32>
    %60 = vector.extract_strided_slice %34 {offsets = [0, 88], sizes = [16, 8], strides = [1, 1]} : vector<16x96xf32> to vector<16x8xf32>
    %61 = vector.shape_cast %57 : vector<16x8xf32> to vector<1x16x8xf32>
    %62 = vector.shape_cast %58 : vector<16x8xf32> to vector<1x16x8xf32>
    %63 = vector.shape_cast %59 : vector<16x8xf32> to vector<1x16x8xf32>
    %64 = vector.shape_cast %60 : vector<16x8xf32> to vector<1x16x8xf32>
    %65 = tpu.concatenate %61, %62, %63, %64 in 0 : vector<1x16x8xf32>, vector<1x16x8xf32>, vector<1x16x8xf32>, vector<1x16x8xf32> -> vector<4x16x8xf32>
    %66 = vector.shape_cast %65 : vector<4x16x8xf32> to vector<4x2x8x8xf32>
    %67 = vector.shape_cast %66 : vector<4x2x8x8xf32> to vector<8x8x8xf32>
    %68 = arith.truncf %45 : vector<8x8x8xf32> to vector<8x8x8xbf16>
    %69 = arith.truncf %56 : vector<8x8x8xf32> to vector<8x8x8xbf16>
    "tpu.trace_start"() <{level = 10 : i32, message = "gqd,gkd->gqk"}> : () -> ()
    %cst_17 = arith.constant dense<0.000000e+00> : vector<8x8x8xf32>
    %70 = tpu.matmul %68, %69, %cst_17 {dimension_numbers = #tpu.dot_dimension_numbers<[2], [2], [1], [1], [0, 0, 0, 1, 1, 1], [0], [0]>} : vector<8x8x8xbf16>, vector<8x8x8xbf16>, vector<8x8x8xf32> -> vector<8x8x8xf32>
    "tpu.trace_stop"() : () -> ()
    %cst_18 = arith.constant dense<0xFF800000> : vector<8x8xf32>
    %71 = vector.multi_reduction <maximumf>, %70, %cst_18 [2] : vector<8x8x8xf32> to vector<8x8xf32>
    %72 = vector.shape_cast %71 : vector<8x8xf32> to vector<8x8x1xf32>
    %73 = vector.broadcast %72 : vector<8x8x1xf32> to vector<8x8x8xf32>
    %74 = arith.subf %70, %73 : vector<8x8x8xf32>
    %75 = math.exp %74 : vector<8x8x8xf32>
    %cst_19 = arith.constant dense<0.000000e+00> : vector<8x8xf32>
    %76 = vector.multi_reduction <add>, %75, %cst_19 [2] : vector<8x8x8xf32> to vector<8x8xf32>
    %77 = vector.shape_cast %76 : vector<8x8xf32> to vector<8x8x1xf32>
    %78 = vector.broadcast %77 : vector<8x8x1xf32> to vector<8x8x8xf32>
    %79 = arith.divf %75, %78 : vector<8x8x8xf32>
    %80 = arith.truncf %79 : vector<8x8x8xf32> to vector<8x8x8xbf16>
    %81 = arith.truncf %67 : vector<8x8x8xf32> to vector<8x8x8xbf16>
    "tpu.trace_start"() <{level = 10 : i32, message = "gqk,gkd->gqd"}> : () -> ()
    %cst_20 = arith.constant dense<0.000000e+00> : vector<8x8x8xf32>
    %82 = tpu.matmul %80, %81, %cst_20 {dimension_numbers = #tpu.dot_dimension_numbers<[2], [1], [1], [2], [0, 0, 0, 1, 1, 2], [0], [0]>} : vector<8x8x8xbf16>, vector<8x8x8xbf16>, vector<8x8x8xf32> -> vector<8x8x8xf32>
    "tpu.trace_stop"() : () -> ()
    %83 = vector.shape_cast %82 : vector<8x8x8xf32> to vector<4x2x8x8xf32>
    %84 = vector.extract_strided_slice %83 {offsets = [0, 0, 0, 0], sizes = [1, 2, 8, 8], strides = [1, 1, 1, 1]} : vector<4x2x8x8xf32> to vector<1x2x8x8xf32>
    %85 = vector.shape_cast %84 : vector<1x2x8x8xf32> to vector<2x8x8xf32>
    %86 = vector.extract_strided_slice %83 {offsets = [1, 0, 0, 0], sizes = [1, 2, 8, 8], strides = [1, 1, 1, 1]} : vector<4x2x8x8xf32> to vector<1x2x8x8xf32>
    %87 = vector.shape_cast %86 : vector<1x2x8x8xf32> to vector<2x8x8xf32>
    %88 = vector.extract_strided_slice %83 {offsets = [2, 0, 0, 0], sizes = [1, 2, 8, 8], strides = [1, 1, 1, 1]} : vector<4x2x8x8xf32> to vector<1x2x8x8xf32>
    %89 = vector.shape_cast %88 : vector<1x2x8x8xf32> to vector<2x8x8xf32>
    %90 = vector.extract_strided_slice %83 {offsets = [3, 0, 0, 0], sizes = [1, 2, 8, 8], strides = [1, 1, 1, 1]} : vector<4x2x8x8xf32> to vector<1x2x8x8xf32>
    %91 = vector.shape_cast %90 : vector<1x2x8x8xf32> to vector<2x8x8xf32>
    %92 = tpu.concatenate %85, %87, %89, %91 in 2 : vector<2x8x8xf32>, vector<2x8x8xf32>, vector<2x8x8xf32>, vector<2x8x8xf32> -> vector<2x8x32xf32>
    %93 = vector.shape_cast %92 : vector<2x8x32xf32> to vector<16x32xf32>
    %94 = arith.truncf %93 : vector<16x32xf32> to vector<16x32xbf16>
    %cst_21 = arith.constant dense<0.000000e+00> : vector<16x32xf32>
    %95 = tpu.matmul %94, %15, %cst_21 {dimension_numbers = #tpu.dot_dimension_numbers<[1], [0], [0], [1], [0, 0, 1, 1], [], []>} : vector<16x32xbf16>, vector<32x32xbf16>, vector<16x32xf32> -> vector<16x32xf32>
    %96 = vector.broadcast %2 : vector<1x32xf32> to vector<16x32xf32>
    %97 = arith.addf %95, %96 : vector<16x32xf32>
    %98 = arith.addf %30, %97 : vector<16x32xf32>
    %cst_22 = arith.constant dense<0.000000e+00> : vector<16xf32>
    %99 = vector.multi_reduction <add>, %98, %cst_22 [1] : vector<16x32xf32> to vector<16xf32>
    %100 = vector.shape_cast %99 : vector<16xf32> to vector<16x1xf32>
    %cst_23 = arith.constant 3.200000e+01 : f32
    %101 = vector.broadcast %cst_23 : f32 to vector<16x1xf32>
    %102 = arith.divf %100, %101 : vector<16x1xf32>
    %103 = vector.broadcast %102 : vector<16x1xf32> to vector<16x32xf32>
    %104 = arith.subf %98, %103 : vector<16x32xf32>
    %105 = arith.mulf %104, %104 : vector<16x32xf32>
    %cst_24 = arith.constant dense<0.000000e+00> : vector<16xf32>
    %106 = vector.multi_reduction <add>, %105, %cst_24 [1] : vector<16x32xf32> to vector<16xf32>
    %107 = vector.shape_cast %106 : vector<16xf32> to vector<16x1xf32>
    %cst_25 = arith.constant 3.200000e+01 : f32
    %108 = vector.broadcast %cst_25 : f32 to vector<16x1xf32>
    %109 = arith.divf %107, %108 : vector<16x1xf32>
    %110 = vector.broadcast %102 : vector<16x1xf32> to vector<16x32xf32>
    %111 = arith.subf %98, %110 : vector<16x32xf32>
    %cst_26 = arith.constant 9.99999974E-6 : f32
    %112 = vector.broadcast %cst_26 : f32 to vector<16x1xf32>
    %113 = arith.addf %109, %112 : vector<16x1xf32>
    %114 = math.rsqrt %113 : vector<16x1xf32>
    %115 = vector.broadcast %114 : vector<16x1xf32> to vector<16x32xf32>
    %116 = arith.mulf %111, %115 : vector<16x32xf32>
    %117 = vector.broadcast %3 : vector<1x32xf32> to vector<16x32xf32>
    %118 = arith.mulf %116, %117 : vector<16x32xf32>
    %119 = vector.broadcast %4 : vector<1x32xf32> to vector<16x32xf32>
    %120 = arith.addf %118, %119 : vector<16x32xf32>
    %121 = arith.truncf %120 : vector<16x32xf32> to vector<16x32xbf16>
    %cst_27 = arith.constant dense<0.000000e+00> : vector<16x64xf32>
    %122 = tpu.matmul %121, %18, %cst_27 {dimension_numbers = #tpu.dot_dimension_numbers<[1], [0], [0], [1], [0, 0, 1, 1], [], []>} : vector<16x32xbf16>, vector<32x64xbf16>, vector<16x64xf32> -> vector<16x64xf32>
    %123 = vector.broadcast %5 : vector<1x64xf32> to vector<16x64xf32>
    %124 = arith.addf %122, %123 : vector<16x64xf32>
    %cst_28 = arith.constant 0.000000e+00 : f32
    %125 = vector.broadcast %cst_28 : f32 to vector<16x64xf32>
    %126 = arith.maximumf %124, %125 : vector<16x64xf32>
    %127 = arith.truncf %126 : vector<16x64xf32> to vector<16x64xbf16>
    %cst_29 = arith.constant dense<0.000000e+00> : vector<16x32xf32>
    %128 = tpu.matmul %127, %21, %cst_29 {dimension_numbers = #tpu.dot_dimension_numbers<[1], [0], [0], [1], [0, 0, 1, 1], [], []>} : vector<16x64xbf16>, vector<64x32xbf16>, vector<16x32xf32> -> vector<16x32xf32>
    %129 = vector.broadcast %6 : vector<1x32xf32> to vector<16x32xf32>
    %130 = arith.addf %128, %129 : vector<16x32xf32>
    %131 = arith.addf %120, %130 : vector<16x32xf32>
    %cst_30 = arith.constant dense<0.000000e+00> : vector<16xf32>
    %132 = vector.multi_reduction <add>, %131, %cst_30 [1] : vector<16x32xf32> to vector<16xf32>
    %133 = vector.shape_cast %132 : vector<16xf32> to vector<16x1xf32>
    %cst_31 = arith.constant 3.200000e+01 : f32
    %134 = vector.broadcast %cst_31 : f32 to vector<16x1xf32>
    %135 = arith.divf %133, %134 : vector<16x1xf32>
    %136 = vector.broadcast %135 : vector<16x1xf32> to vector<16x32xf32>
    %137 = arith.subf %131, %136 : vector<16x32xf32>
    %138 = arith.mulf %137, %137 : vector<16x32xf32>
    %cst_32 = arith.constant dense<0.000000e+00> : vector<16xf32>
    %139 = vector.multi_reduction <add>, %138, %cst_32 [1] : vector<16x32xf32> to vector<16xf32>
    %140 = vector.shape_cast %139 : vector<16xf32> to vector<16x1xf32>
    %cst_33 = arith.constant 3.200000e+01 : f32
    %141 = vector.broadcast %cst_33 : f32 to vector<16x1xf32>
    %142 = arith.divf %140, %141 : vector<16x1xf32>
    %143 = vector.broadcast %135 : vector<16x1xf32> to vector<16x32xf32>
    %144 = arith.subf %131, %143 : vector<16x32xf32>
    %cst_34 = arith.constant 9.99999974E-6 : f32
    %145 = vector.broadcast %cst_34 : f32 to vector<16x1xf32>
    %146 = arith.addf %142, %145 : vector<16x1xf32>
    %147 = math.rsqrt %146 : vector<16x1xf32>
    %148 = vector.broadcast %147 : vector<16x1xf32> to vector<16x32xf32>
    %149 = arith.mulf %144, %148 : vector<16x32xf32>
    %150 = vector.broadcast %7 : vector<1x32xf32> to vector<16x32xf32>
    %151 = arith.mulf %149, %150 : vector<16x32xf32>
    %152 = vector.broadcast %8 : vector<1x32xf32> to vector<16x32xf32>
    %153 = arith.addf %151, %152 : vector<16x32xf32>
    %154 = vector.shape_cast %153 : vector<16x32xf32> to vector<2x8x32xf32>
    %cst_35 = arith.constant dense<0.000000e+00> : vector<2x32xf32>
    %155 = vector.multi_reduction <add>, %154, %cst_35 [1] : vector<2x8x32xf32> to vector<2x32xf32>
    %cst_36 = arith.constant 8.000000e+00 : f32
    %156 = vector.broadcast %cst_36 : f32 to vector<2x32xf32>
    %157 = arith.divf %155, %156 : vector<2x32xf32>
    %158 = arith.truncf %157 : vector<2x32xf32> to vector<2x32xbf16>
    %cst_37 = arith.constant dense<0.000000e+00> : vector<2x128xf32>
    %159 = tpu.matmul %158, %24, %cst_37 {dimension_numbers = #tpu.dot_dimension_numbers<[1], [0], [0], [1], [0, 0, 1, 1], [], []>} : vector<2x32xbf16>, vector<32x128xbf16>, vector<2x128xf32> -> vector<2x128xf32>
    %160 = vector.broadcast %9 : vector<1x128xf32> to vector<2x128xf32>
    %161 = arith.addf %159, %160 : vector<2x128xf32>
    %c0_38 = arith.constant 0 : index
    %c0_39 = arith.constant 0 : index
    %162 = vector.load %arg5[%c0_38, %c0_39] : memref<2x128xf32, #tpu.memory_space<vmem>>, vector<2x128xf32>
    tpu.vector_store %arg5[%c0_38, %c0_39], %161 {strides = array<i32>} : memref<2x128xf32, #tpu.memory_space<vmem>>, vector<2x128xf32>,
    return
  }
  func.func @transform_0(%arg0: i32) -> (i32, i32, i32) {
    %c0_i32 = arith.constant 0 : i32
    %c0_i32_0 = arith.constant 0 : i32
    %c0_i32_1 = arith.constant 0 : i32
    %c0_i32_2 = arith.constant 0 : i32
    return %c0_i32, %c0_i32_0, %c0_i32_1 : i32, i32, i32
  }
  func.func @transform_1(%arg0: i32) -> (i32, i32) {
    %c0_i32 = arith.constant 0 : i32
    %c0_i32_0 = arith.constant 0 : i32
    %c0_i32_1 = arith.constant 0 : i32
    return %c0_i32, %c0_i32_0 : i32, i32
  }
  func.func @transform_2(%arg0: i32) -> (i32, i32, i32) {
    %c0_i32 = arith.constant 0 : i32
    %c0_i32_0 = arith.constant 0 : i32
    %c0_i32_1 = arith.constant 0 : i32
    %c0_i32_2 = arith.constant 0 : i32
    return %c0_i32, %c0_i32_0, %c0_i32_1 : i32, i32, i32
  }
  func.func @transform_3(%arg0: i32) -> (i32, i32) {
    %c0_i32 = arith.constant 0 : i32
    %c0_i32_0 = arith.constant 0 : i32
    %c0_i32_1 = arith.constant 0 : i32
    return %c0_i32, %c0_i32_0 : i32, i32
  }
  func.func @transform_4(%arg0: i32) -> (i32, i32) {
    %c0_i32 = arith.constant 0 : i32
    %c0_i32_0 = arith.constant 0 : i32
    %c0_i32_1 = arith.constant 0 : i32
    return %c0_i32, %c0_i32_0 : i32, i32
  }
}

</mosaic_0001>

<llo_original>
// kernel: tpu_custom_call.1
$region0: #{tpu_custom_call.1}
  #allocation0 [shape = 'u32[]', space=smem, size = 0x4, offset = 0x4, fixed_abs, tag = 'smem constant byte address 0x4 - core index']
  #allocation1 [shape = 'u32[144,128]{1,0:T(1,128)}', space=vmem, size = 0x12000, scoped, tag = 'internal scratch']
  %s0 = inlined_call_operand.hbm [shape: f32[2,8,32], index: 0, kind: input, shape index: {}]
  %s1 = inlined_call_operand.hbm [shape: f32[8,32], index: 1, kind: input, shape index: {}]
  %s2 = inlined_call_operand.hbm [shape: bf16[5,128,128], index: 2, kind: input, shape index: {}]
  %s3 = inlined_call_operand.hbm [shape: f32[16,128], index: 3, kind: input, shape index: {}]
  %s4 = inlined_call_operand.hbm [shape: f32[2,128], index: 4, kind: output, shape index: {}]
  %s5 = sld [smem:[#allocation0]]
  $region42: #{tpu_custom_call.1} parent=0
    _
  %s7 = ssub.s32 1, %s5
  %s8 = scalar_select 0, %s7, %s5
  $region1: #{tpu_custom_call.1} parent=0
    #allocation2 [shape = 'u8[8192]{0}', space=vmem, size = 0x2000, scoped, tag = 'input window, operand 0, single buffered']
    #allocation3 [shape = 's32[1]{0}', space=sflag, size = 0x4, scoped, tag = 'scoped memory for tpu_custom_call.1']
    #allocation4 [shape = 's32[1]{0}', space=sflag, size = 0x4, scoped, tag = 'scoped memory for tpu_custom_call.1']
    #allocation5 [shape = 'u8[4096]{0}', space=vmem, size = 0x1000, scoped, tag = 'input window, operand 1, single buffered']
    #allocation6 [shape = 's32[1]{0}', space=sflag, size = 0x4, scoped, tag = 'scoped memory for tpu_custom_call.1']
    #allocation7 [shape = 'u8[163840]{0}', space=vmem, size = 0x28000, scoped, tag = 'input window, operand 2, single buffered']
    #allocation8 [shape = 'u8[8192]{0}', space=vmem, size = 0x2000, scoped, tag = 'input window, operand 3, single buffered']
    #allocation9 [shape = 's32[1]{0}', space=sflag, size = 0x4, scoped, tag = 'scoped memory for tpu_custom_call.1']
    #allocation10 [shape = 'u8[1024]{0}', space=vmem, size = 0x400, scoped, tag = 'output window, operand 0, single buffered']
    %9 = vsyncpa [#allocation3], 0
    %10 = vsyncpa [#allocation6], 0
    %11 = vsyncpa [#allocation9], 0
    %12 = vsyncpa [#allocation4], 0
    // Predicated region
    $region2: #{tpu_custom_call.1} parent=1 // pred_check
      _
    $region3: #{tpu_custom_call.1} parent=1 // pred_check_branch
      %14 = sbr.rel (0) target = $region5
    $region4: #{tpu_custom_call.1} parent=1 // pred_region
      %s16 = ssub.s32 256, 256
      %17 = vsyncadd [#allocation3], %s16
      %s18 = sshll.u32 [#allocation2], 4
      %s19 = int_to_ptr.vmem [resolvable:$true] %s18
      %24 = dma.hbm_to_vmem [thread:$0]  %s0, 256, %s19, [#allocation3], 128, 128, 8
    $region5: #{tpu_custom_call.1} parent=1 // pred_fallthru
      _
    // Predicated region
    $region6: #{tpu_custom_call.1} parent=1 // pred_check
      _
    $region7: #{tpu_custom_call.1} parent=1 // pred_check_branch
      %26 = sbr.rel (0) target = $region9
    $region8: #{tpu_custom_call.1} parent=1 // pred_region
      %s28 = ssub.s32 128, 128
      %29 = vsyncadd [#allocation6], %s28
      %s31 = sshll.u32 [#allocation5], 4
      %s32 = int_to_ptr.vmem [resolvable:$true] %s31
      %34 = dma.hbm_to_vmem [thread:$0]  %s1, 128, %s32, [#allocation6]
    $region9: #{tpu_custom_call.1} parent=1 // pred_fallthru
      _
    // Predicated region
    $region10: #{tpu_custom_call.1} parent=1 // pred_check
      _
    $region11: #{tpu_custom_call.1} parent=1 // pred_check_branch
      %36 = sbr.rel (0) target = $region13
    $region12: #{tpu_custom_call.1} parent=1 // pred_region
      %s38 = ssub.s32 5120, 5120
      %39 = vsyncadd [#allocation6], %s38
      %s40 = sshll.u32 [#allocation7], 4
      %s41 = int_to_ptr.vmem [resolvable:$true] %s40
      %46 = dma.hbm_to_vmem [thread:$0]  %s2, 5120, %s41, [#allocation6], 64, 64, 4
    $region13: #{tpu_custom_call.1} parent=1 // pred_fallthru
      _
    // Predicated region
    $region14: #{tpu_custom_call.1} parent=1 // pred_check
      _
    $region15: #{tpu_custom_call.1} parent=1 // pred_check_branch
      %48 = sbr.rel (0) target = $region17
    $region16: #{tpu_custom_call.1} parent=1 // pred_region
      %s50 = ssub.s32 256, 256
      %51 = vsyncadd [#allocation9], %s50
      %s52 = sshll.u32 [#allocation8], 4
      %s53 = int_to_ptr.vmem [resolvable:$true] %s52
      %58 = dma.hbm_to_vmem [thread:$0]  %s3, 256, %s53, [#allocation9], 128, 128, 8
    $region17: #{tpu_custom_call.1} parent=1 // pred_fallthru
      _
    // Predicated region
    $region18: #{tpu_custom_call.1} parent=1 // pred_check
      _
    $region19: #{tpu_custom_call.1} parent=1 // pred_check_branch
      %60 = sbr.rel (0) target = $region21
    $region20: #{tpu_custom_call.1} parent=1 // pred_region
      %61 = dma.done [#allocation3], 256
    $region21: #{tpu_custom_call.1} parent=1 // pred_fallthru
      _
    // Predicated region
    $region22: #{tpu_custom_call.1} parent=1 // pred_check
      _
    $region23: #{tpu_custom_call.1} parent=1 // pred_check_branch
      %63 = sbr.rel (0) target = $region25
    $region24: #{tpu_custom_call.1} parent=1 // pred_region
      %64 = dma.done [#allocation6], 128
    $region25: #{tpu_custom_call.1} parent=1 // pred_fallthru
      _
    // Predicated region
    $region26: #{tpu_custom_call.1} parent=1 // pred_check
      _
    $region27: #{tpu_custom_call.1} parent=1 // pred_check_branch
      %66 = sbr.rel (0) target = $region29
    $region28: #{tpu_custom_call.1} parent=1 // pred_region
      %67 = dma.done [#allocation6], 5120
    $region29: #{tpu_custom_call.1} parent=1 // pred_fallthru
      _
    // Predicated region
    $region30: #{tpu_custom_call.1} parent=1 // pred_check
      _
    $region31: #{tpu_custom_call.1} parent=1 // pred_check_branch
      %69 = sbr.rel (0) target = $region33
    $region32: #{tpu_custom_call.1} parent=1 // pred_region
      %70 = dma.done [#allocation9], 256
    $region33: #{tpu_custom_call.1} parent=1 // pred_fallthru
      _
    %v72 = vld [vmem:[#allocation8] sm:$0xff]
    %v73 = vld [vmem:[#allocation8 + $0x8] sm:$0xff]
    %v74 = vld [vmem:[#allocation7] sm:$0xf]
    %v75 = vld [vmem:[#allocation7 + $0x4] sm:$0xf]
    %v76 = vld [vmem:[#allocation7 + $0x8] sm:$0xf]
    %v77 = vld [vmem:[#allocation7 + $0xc] sm:$0xf]
    %s78 = scalar_lea.vmem [#allocation7], 64
    %v79 = vld [vmem:[%s78] sm:$0xf]
    %v80 = vld [vmem:[%s78 + $0x4] sm:$0xf]
    %v81 = vld [vmem:[%s78 + $0x8] sm:$0xf]
    %v82 = vld [vmem:[%s78 + $0xc] sm:$0xf]
    %s83 = scalar_lea.vmem [#allocation7], 128
    %v84 = vld [vmem:[%s83] sm:$0xf]
    %v85 = vld [vmem:[%s83 + $0x4] sm:$0xf]
    %v86 = vld [vmem:[%s83 + $0x8] sm:$0xf]
    %v87 = vld [vmem:[%s83 + $0xc] sm:$0xf]
    %s88 = scalar_lea.vmem [#allocation7], 192
    %v89 = vld [vmem:[%s88] sm:$0xf]
    %v90 = vld [vmem:[%s88 + $0x4] sm:$0xf]
    %v91 = vld [vmem:[%s88 + $0x8] sm:$0xf]
    %v92 = vld [vmem:[%s88 + $0xc] sm:$0xf]
    %v93 = vld [vmem:[%s88 + $0x10] sm:$0xf]
    %v94 = vld [vmem:[%s88 + $0x14] sm:$0xf]
    %v95 = vld [vmem:[%s88 + $0x18] sm:$0xf]
    %v96 = vld [vmem:[%s88 + $0x1c] sm:$0xf]
    %s97 = scalar_lea.vmem [#allocation7], 256
    %v98 = vld [vmem:[%s97] sm:$0xf]
    %v99 = vld [vmem:[%s97 + $0x4] sm:$0xf]
    %v100 = vld [vmem:[%s97 + $0x8] sm:$0xf]
    %v101 = vld [vmem:[%s97 + $0xc] sm:$0xf]
    %v102 = vld [vmem:[#allocation2] sm:$0xff]
    %v103 = vld [vmem:[#allocation2 + $0x8] sm:$0xff]
    %v104 = vld [vmem:[#allocation5] sm:$0xff]
    %v105 = vadd.f32 %v102, %v104
    %v106 = vadd.f32 %v103, %v104
    %v107 = vpack.c.bf16 %v106, %v105
    %v108 = vlaneseq
    %v109 = vshrl.u32 %v108, 7
    %v110 = vsub.s32 0, %v109
    %v111 = vrot.slane %v72, %v110
    %v116 = vunpack.c.l.b16 %v74
    %v117 = vunpack.c.l.b16 %v75
    %v118 = vunpack.c.l.b16 %v76
    %v119 = vunpack.c.l.b16 %v77
    %v120 = vpack.c.b16 %v117, %v116
    %v121 = vpack.c.b16 %v119, %v118
    %vm124 = vcmask 261120
    %v126 = vsel %vm124, %v107, 0
    %128 = vmatprep.subr.bf16.mxu0 0
    %129 = vmatpush1.bf16.msra.mxu0 0
    %130 = vmatprep.subr.bf16.mxu0 0
    %131 = vmatpush1.bf16.msra.mxu0 0
    %132 = vmatprep.subr.bf16.mxu0 0
    %133 = vmatpush1.bf16.msra.mxu0 0
    %134 = vmatprep.subr.bf16.mxu0 0
    %135 = vmatpush1.bf16.msra.mxu0 0
    %136 = vmatprep.subr.bf16.mxu0 0
    %137 = vmatpush1.bf16.msra.mxu0 0
    %138 = vmatprep.subr.bf16.mxu0 0
    %139 = vmatpush1.bf16.msra.mxu0 0
    %140 = vmatprep.subr.bf16.mxu0 0
    %141 = vmatpush1.bf16.msra.mxu0 %v121
    %142 = vmatprep.subr.bf16.mxu0 0
    %143 = vmatpush1.bf16.msra.mxu0 %v120
    %144 = vmatprep.subr.bf16.mxu0 0
    %145 = vmatpush2.bf16.msra.mxu0 0
    %146 = vmatprep.subr.bf16.mxu0 0
    %147 = vmatpush2.bf16.msra.mxu0 0
    %148 = vmatprep.subr.bf16.mxu0 0
    %149 = vmatpush2.bf16.msra.mxu0 0
    %150 = vmatprep.subr.bf16.mxu0 0
    %151 = vmatpush2.bf16.msra.mxu0 0
    %152 = vmatprep.subr.bf16.mxu0 0
    %153 = vmatpush2.bf16.msra.mxu0 0
    %154 = vmatprep.subr.bf16.mxu0 0
    %155 = vmatpush2.bf16.msra.mxu0 0
    %156 = vmatprep.subr.bf16.mxu0 0
    %157 = vmatpush2.bf16.msra.mxu0 0
    %158 = vmatprep.subr.bf16.mxu0 0
    %159 = vmatpush2.bf16.msra.mxu0 0
    %160 = vmatprep.mubr.bf16.mxu0 0
    %161 = vmatmul.mubr.bf16.gmra.mxu0 %v126
    %v162 = vpop.f32.mrf.mxu0
    %v163 = vadd.f32 %v111, %v162
    %v164 = vpop.f32.mrf.mxu0
    %v165 = vpop.f32.mrf.mxu0
    %v166 = vadd.f32 %v111, %v165
    %v167 = vpop.f32.mrf.mxu0
    %168 = vdwg.mxu0
    %171 = vrot.lane.b32.xlu0 %v163, 120
    %v172 = vpop.permute.xlu0 %171
    %173 = vrot.lane.b32.xlu0 %v166, 120
    %v174 = vpop.permute.xlu0 %173
    %177 = vrot.lane.b32.xlu0 %v163, 112
    %v178 = vpop.permute.xlu0 %177
    %179 = vrot.lane.b32.xlu0 %v166, 112
    %v180 = vpop.permute.xlu0 %179
    %183 = vrot.lane.b32.xlu0 %v163, 104
    %v184 = vpop.permute.xlu0 %183
    %185 = vrot.lane.b32.xlu0 %v166, 104
    %v186 = vpop.permute.xlu0 %185
    %v189 = vpack.c.bf16 %v163, %v163
    %v190 = vpack.c.bf16 %v166, %v166
    %v191 = vpack.c.bf16 %v172, %v172
    %v192 = vpack.c.bf16 %v174, %v174
    %v193 = vpack.c.bf16 %v178, %v178
    %v194 = vpack.c.bf16 %v180, %v180
    %v195 = vpack.c.bf16 %v184, %v184
    %v196 = vpack.c.bf16 %v186, %v186
    %198 = vrot.lane.b32.xlu0 %v189, 96
    %v199 = vpop.permute.xlu0 %198
    %vm200 = vcmask 64512
    %v202 = vsel %vm200, %v189, 0
    %v205 = vsel %vm200, %v199, 0
    %207 = vmatprep.subr.bf16.mxu0 0
    %208 = vmatpush1.bf16.xpose.msra.mxu0 0
    %209 = vmatprep.subr.bf16.mxu0 0
    %210 = vmatpush1.bf16.xpose.msra.mxu0 0
    %211 = vmatprep.subr.bf16.mxu0 0
    %212 = vmatpush1.bf16.xpose.msra.mxu0 0
    %213 = vmatprep.subr.bf16.mxu0 0
    %214 = vmatpush1.bf16.xpose.msra.mxu0 0
    %215 = vmatprep.subr.bf16.mxu0 0
    %216 = vmatpush1.bf16.xpose.msra.mxu0 0
    %217 = vmatprep.subr.bf16.mxu0 0
    %218 = vmatpush1.bf16.xpose.msra.mxu0 0
    %219 = vmatprep.subr.bf16.mxu0 0
    %220 = vmatpush1.bf16.xpose.msra.mxu0 0
    %221 = vmatprep.subr.bf16.mxu0 0
    %222 = vmatpush1.bf16.xpose.msra.mxu0 %v205
    %223 = vmatprep.subr.bf16.mxu0 0
    %224 = vmatpush2.bf16.xpose.msra.mxu0 0
    %225 = vmatprep.subr.bf16.mxu0 0
    %226 = vmatpush2.bf16.xpose.msra.mxu0 0
    %227 = vmatprep.subr.bf16.mxu0 0
    %228 = vmatpush2.bf16.xpose.msra.mxu0 0
    %229 = vmatprep.subr.bf16.mxu0 0
    %230 = vmatpush2.bf16.xpose.msra.mxu0 0
    %231 = vmatprep.subr.bf16.mxu0 0
    %232 = vmatpush2.bf16.xpose.msra.mxu0 0
    %233 = vmatprep.subr.bf16.mxu0 0
    %234 = vmatpush2.bf16.xpose.msra.mxu0 0
    %235 = vmatprep.subr.bf16.mxu0 0
    %236 = vmatpush2.bf16.xpose.msra.mxu0 0
    %237 = vmatprep.subr.bf16.mxu0 0
    %238 = vmatpush2.bf16.xpose.msra.mxu0 0
    %239 = vmatprep.mubr.bf16.mxu0 0
    %240 = vmatmul.mubr.bf16.gmra.mxu0 %v202
    %v241 = vpop.f32.mrf.mxu0
    %v242 = vadd.f32 0.0, %v241
    %v243 = vpop.f32.mrf.mxu0
    %v244 = vpop.f32.mrf.mxu0
    %v245 = vpop.f32.mrf.mxu0
    %246 = vdwg.mxu0
    %248 = vrot.lane.b32.xlu0 %v190, 96
    %v249 = vpop.permute.xlu0 %248
    %v251 = vsel %vm200, %v190, 0
    %v254 = vsel %vm200, %v249, 0
    %256 = vmatprep.subr.bf16.mxu0 0
    %257 = vmatpush1.bf16.xpose.msra.mxu0 0
    %258 = vmatprep.subr.bf16.mxu0 0
    %259 = vmatpush1.bf16.xpose.msra.mxu0 0
    %260 = vmatprep.subr.bf16.mxu0 0
    %261 = vmatpush1.bf16.xpose.msra.mxu0 0
    %262 = vmatprep.subr.bf16.mxu0 0
    %263 = vmatpush1.bf16.xpose.msra.mxu0 0
    %264 = vmatprep.subr.bf16.mxu0 0
    %265 = vmatpush1.bf16.xpose.msra.mxu0 0
    %266 = vmatprep.subr.bf16.mxu0 0
    %267 = vmatpush1.bf16.xpose.msra.mxu0 0
    %268 = vmatprep.subr.bf16.mxu0 0
    %269 = vmatpush1.bf16.xpose.msra.mxu0 0
    %270 = vmatprep.subr.bf16.mxu0 0
    %271 = vmatpush1.bf16.xpose.msra.mxu0 %v254
    %272 = vmatprep.subr.bf16.mxu0 0
    %273 = vmatpush2.bf16.xpose.msra.mxu0 0
    %274 = vmatprep.subr.bf16.mxu0 0
    %275 = vmatpush2.bf16.xpose.msra.mxu0 0
    %276 = vmatprep.subr.bf16.mxu0 0
    %277 = vmatpush2.bf16.xpose.msra.mxu0 0
    %278 = vmatprep.subr.bf16.mxu0 0
    %279 = vmatpush2.bf16.xpose.msra.mxu0 0
    %280 = vmatprep.subr.bf16.mxu0 0
    %281 = vmatpush2.bf16.xpose.msra.mxu0 0
    %282 = vmatprep.subr.bf16.mxu0 0
    %283 = vmatpush2.bf16.xpose.msra.mxu0 0
    %284 = vmatprep.subr.bf16.mxu0 0
    %285 = vmatpush2.bf16.xpose.msra.mxu0 0
    %286 = vmatprep.subr.bf16.mxu0 0
    %287 = vmatpush2.bf16.xpose.msra.mxu0 0
    %288 = vmatprep.mubr.bf16.mxu0 0
    %289 = vmatmul.mubr.bf16.gmra.mxu0 %v251
    %v290 = vpop.f32.mrf.mxu0
    %v291 = vadd.f32 0.0, %v290
    %v292 = vpop.f32.mrf.mxu0
    %v293 = vpop.f32.mrf.mxu0
    %v294 = vpop.f32.mrf.mxu0
    %295 = vdwg.mxu0
    %297 = vrot.lane.b32.xlu0 %v191, 96
    %v298 = vpop.permute.xlu0 %297
    %v300 = vsel %vm200, %v191, 0
    %v303 = vsel %vm200, %v298, 0
    %305 = vmatprep.subr.bf16.mxu0 0
    %306 = vmatpush1.bf16.xpose.msra.mxu0 0
    %307 = vmatprep.subr.bf16.mxu0 0
    %308 = vmatpush1.bf16.xpose.msra.mxu0 0
    %309 = vmatprep.subr.bf16.mxu0 0
    %310 = vmatpush1.bf16.xpose.msra.mxu0 0
    %311 = vmatprep.subr.bf16.mxu0 0
    %312 = vmatpush1.bf16.xpose.msra.mxu0 0
    %313 = vmatprep.subr.bf16.mxu0 0
    %314 = vmatpush1.bf16.xpose.msra.mxu0 0
    %315 = vmatprep.subr.bf16.mxu0 0
    %316 = vmatpush1.bf16.xpose.msra.mxu0 0
    %317 = vmatprep.subr.bf16.mxu0 0
    %318 = vmatpush1.bf16.xpose.msra.mxu0 0
    %319 = vmatprep.subr.bf16.mxu0 0
    %320 = vmatpush1.bf16.xpose.msra.mxu0 %v303
    %321 = vmatprep.subr.bf16.mxu0 0
    %322 = vmatpush2.bf16.xpose.msra.mxu0 0
    %323 = vmatprep.subr.bf16.mxu0 0
    %324 = vmatpush2.bf16.xpose.msra.mxu0 0
    %325 = vmatprep.subr.bf16.mxu0 0
    %326 = vmatpush2.bf16.xpose.msra.mxu0 0
    %327 = vmatprep.subr.bf16.mxu0 0
    %328 = vmatpush2.bf16.xpose.msra.mxu0 0
    %329 = vmatprep.subr.bf16.mxu0 0
    %330 = vmatpush2.bf16.xpose.msra.mxu0 0
    %331 = vmatprep.subr.bf16.mxu0 0
    %332 = vmatpush2.bf16.xpose.msra.mxu0 0
    %333 = vmatprep.subr.bf16.mxu0 0
    %334 = vmatpush2.bf16.xpose.msra.mxu0 0
    %335 = vmatprep.subr.bf16.mxu0 0
    %336 = vmatpush2.bf16.xpose.msra.mxu0 0
    %337 = vmatprep.mubr.bf16.mxu0 0
    %338 = vmatmul.mubr.bf16.gmra.mxu0 %v300
    %v339 = vpop.f32.mrf.mxu0
    %v340 = vadd.f32 0.0, %v339
    %v341 = vpop.f32.mrf.mxu0
    %v342 = vpop.f32.mrf.mxu0
    %v343 = vpop.f32.mrf.mxu0
    %344 = vdwg.mxu0
    %346 = vrot.lane.b32.xlu0 %v192, 96
    %v347 = vpop.permute.xlu0 %346
    %v349 = vsel %vm200, %v192, 0
    %v352 = vsel %vm200, %v347, 0
    %354 = vmatprep.subr.bf16.mxu0 0
    %355 = vmatpush1.bf16.xpose.msra.mxu0 0
    %356 = vmatprep.subr.bf16.mxu0 0
    %357 = vmatpush1.bf16.xpose.msra.mxu0 0
    %358 = vmatprep.subr.bf16.mxu0 0
    %359 = vmatpush1.bf16.xpose.msra.mxu0 0
    %360 = vmatprep.subr.bf16.mxu0 0
    %361 = vmatpush1.bf16.xpose.msra.mxu0 0
    %362 = vmatprep.subr.bf16.mxu0 0
    %363 = vmatpush1.bf16.xpose.msra.mxu0 0
    %364 = vmatprep.subr.bf16.mxu0 0
    %365 = vmatpush1.bf16.xpose.msra.mxu0 0
    %366 = vmatprep.subr.bf16.mxu0 0
    %367 = vmatpush1.bf16.xpose.msra.mxu0 0
    %368 = vmatprep.subr.bf16.mxu0 0
    %369 = vmatpush1.bf16.xpose.msra.mxu0 %v352
    %370 = vmatprep.subr.bf16.mxu0 0
    %371 = vmatpush2.bf16.xpose.msra.mxu0 0
    %372 = vmatprep.subr.bf16.mxu0 0
    %373 = vmatpush2.bf16.xpose.msra.mxu0 0
    %374 = vmatprep.subr.bf16.mxu0 0
    %375 = vmatpush2.bf16.xpose.msra.mxu0 0
    %376 = vmatprep.subr.bf16.mxu0 0
    %377 = vmatpush2.bf16.xpose.msra.mxu0 0
    %378 = vmatprep.subr.bf16.mxu0 0
    %379 = vmatpush2.bf16.xpose.msra.mxu0 0
    %380 = vmatprep.subr.bf16.mxu0 0
    %381 = vmatpush2.bf16.xpose.msra.mxu0 0
    %382 = vmatprep.subr.bf16.mxu0 0
    %383 = vmatpush2.bf16.xpose.msra.mxu0 0
    %384 = vmatprep.subr.bf16.mxu0 0
    %385 = vmatpush2.bf16.xpose.msra.mxu0 0
    %386 = vmatprep.mubr.bf16.mxu0 0
    %387 = vmatmul.mubr.bf16.gmra.mxu0 %v349
    %v388 = vpop.f32.mrf.mxu0
    %v389 = vadd.f32 0.0, %v388
    %v390 = vpop.f32.mrf.mxu0
    %v391 = vpop.f32.mrf.mxu0
    %v392 = vpop.f32.mrf.mxu0
    %393 = vdwg.mxu0
    %395 = vrot.lane.b32.xlu0 %v193, 96
    %v396 = vpop.permute.xlu0 %395
    %v398 = vsel %vm200, %v193, 0
    %v401 = vsel %vm200, %v396, 0
    %403 = vmatprep.subr.bf16.mxu0 0
    %404 = vmatpush1.bf16.xpose.msra.mxu0 0
    %405 = vmatprep.subr.bf16.mxu0 0
    %406 = vmatpush1.bf16.xpose.msra.mxu0 0
    %407 = vmatprep.subr.bf16.mxu0 0
    %408 = vmatpush1.bf16.xpose.msra.mxu0 0
    %409 = vmatprep.subr.bf16.mxu0 0
    %410 = vmatpush1.bf16.xpose.msra.mxu0 0
    %411 = vmatprep.subr.bf16.mxu0 0
    %412 = vmatpush1.bf16.xpose.msra.mxu0 0
    %413 = vmatprep.subr.bf16.mxu0 0
    %414 = vmatpush1.bf16.xpose.msra.mxu0 0
    %415 = vmatprep.subr.bf16.mxu0 0
    %416 = vmatpush1.bf16.xpose.msra.mxu0 0
    %417 = vmatprep.subr.bf16.mxu0 0
    %418 = vmatpush1.bf16.xpose.msra.mxu0 %v401
    %419 = vmatprep.subr.bf16.mxu0 0
    %420 = vmatpush2.bf16.xpose.msra.mxu0 0
    %421 = vmatprep.subr.bf16.mxu0 0
    %422 = vmatpush2.bf16.xpose.msra.mxu0 0
    %423 = vmatprep.subr.bf16.mxu0 0
    %424 = vmatpush2.bf16.xpose.msra.mxu0 0
    %425 = vmatprep.subr.bf16.mxu0 0
    %426 = vmatpush2.bf16.xpose.msra.mxu0 0
    %427 = vmatprep.subr.bf16.mxu0 0
    %428 = vmatpush2.bf16.xpose.msra.mxu0 0
    %429 = vmatprep.subr.bf16.mxu0 0
    %430 = vmatpush2.bf16.xpose.msra.mxu0 0
    %431 = vmatprep.subr.bf16.mxu0 0
    %432 = vmatpush2.bf16.xpose.msra.mxu0 0
    %433 = vmatprep.subr.bf16.mxu0 0
    %434 = vmatpush2.bf16.xpose.msra.mxu0 0
    %435 = vmatprep.mubr.bf16.mxu0 0
    %436 = vmatmul.mubr.bf16.gmra.mxu0 %v398
    %v437 = vpop.f32.mrf.mxu0
    %v438 = vadd.f32 0.0, %v437
    %v439 = vpop.f32.mrf.mxu0
    %v440 = vpop.f32.mrf.mxu0
    %v441 = vpop.f32.mrf.mxu0
    %442 = vdwg.mxu0
    %444 = vrot.lane.b32.xlu0 %v194, 96
    %v445 = vpop.permute.xlu0 %444
    %v447 = vsel %vm200, %v194, 0
    %v450 = vsel %vm200, %v445, 0
    %452 = vmatprep.subr.bf16.mxu0 0
    %453 = vmatpush1.bf16.xpose.msra.mxu0 0
    %454 = vmatprep.subr.bf16.mxu0 0
    %455 = vmatpush1.bf16.xpose.msra.mxu0 0
    %456 = vmatprep.subr.bf16.mxu0 0
    %457 = vmatpush1.bf16.xpose.msra.mxu0 0
    %458 = vmatprep.subr.bf16.mxu0 0
    %459 = vmatpush1.bf16.xpose.msra.mxu0 0
    %460 = vmatprep.subr.bf16.mxu0 0
    %461 = vmatpush1.bf16.xpose.msra.mxu0 0
    %462 = vmatprep.subr.bf16.mxu0 0
    %463 = vmatpush1.bf16.xpose.msra.mxu0 0
    %464 = vmatprep.subr.bf16.mxu0 0
    %465 = vmatpush1.bf16.xpose.msra.mxu0 0
    %466 = vmatprep.subr.bf16.mxu0 0
    %467 = vmatpush1.bf16.xpose.msra.mxu0 %v450
    %468 = vmatprep.subr.bf16.mxu0 0
    %469 = vmatpush2.bf16.xpose.msra.mxu0 0
    %470 = vmatprep.subr.bf16.mxu0 0
    %471 = vmatpush2.bf16.xpose.msra.mxu0 0
    %472 = vmatprep.subr.bf16.mxu0 0
    %473 = vmatpush2.bf16.xpose.msra.mxu0 0
    %474 = vmatprep.subr.bf16.mxu0 0
    %475 = vmatpush2.bf16.xpose.msra.mxu0 0
    %476 = vmatprep.subr.bf16.mxu0 0
    %477 = vmatpush2.bf16.xpose.msra.mxu0 0
    %478 = vmatprep.subr.bf16.mxu0 0
    %479 = vmatpush2.bf16.xpose.msra.mxu0 0
    %480 = vmatprep.subr.bf16.mxu0 0
    %481 = vmatpush2.bf16.xpose.msra.mxu0 0
    %482 = vmatprep.subr.bf16.mxu0 0
    %483 = vmatpush2.bf16.xpose.msra.mxu0 0
    %484 = vmatprep.mubr.bf16.mxu0 0
    %485 = vmatmul.mubr.bf16.gmra.mxu0 %v447
    %v486 = vpop.f32.mrf.mxu0
    %v487 = vadd.f32 0.0, %v486
    %v488 = vpop.f32.mrf.mxu0
    %v489 = vpop.f32.mrf.mxu0
    %v490 = vpop.f32.mrf.mxu0
    %491 = vdwg.mxu0
    %493 = vrot.lane.b32.xlu0 %v195, 96
    %v494 = vpop.permute.xlu0 %493
    %v496 = vsel %vm200, %v195, 0
    %v499 = vsel %vm200, %v494, 0
    %501 = vmatprep.subr.bf16.mxu0 0
    %502 = vmatpush1.bf16.xpose.msra.mxu0 0
    %503 = vmatprep.subr.bf16.mxu0 0
    %504 = vmatpush1.bf16.xpose.msra.mxu0 0
    %505 = vmatprep.subr.bf16.mxu0 0
    %506 = vmatpush1.bf16.xpose.msra.mxu0 0
    %507 = vmatprep.subr.bf16.mxu0 0
    %508 = vmatpush1.bf16.xpose.msra.mxu0 0
    %509 = vmatprep.subr.bf16.mxu0 0
    %510 = vmatpush1.bf16.xpose.msra.mxu0 0
    %511 = vmatprep.subr.bf16.mxu0 0
    %512 = vmatpush1.bf16.xpose.msra.mxu0 0
    %513 = vmatprep.subr.bf16.mxu0 0
    %514 = vmatpush1.bf16.xpose.msra.mxu0 0
    %515 = vmatprep.subr.bf16.mxu0 0
    %516 = vmatpush1.bf16.xpose.msra.mxu0 %v499
    %517 = vmatprep.subr.bf16.mxu0 0
    %518 = vmatpush2.bf16.xpose.msra.mxu0 0
    %519 = vmatprep.subr.bf16.mxu0 0
    %520 = vmatpush2.bf16.xpose.msra.mxu0 0
    %521 = vmatprep.subr.bf16.mxu0 0
    %522 = vmatpush2.bf16.xpose.msra.mxu0 0
    %523 = vmatprep.subr.bf16.mxu0 0
    %524 = vmatpush2.bf16.xpose.msra.mxu0 0
    %525 = vmatprep.subr.bf16.mxu0 0
    %526 = vmatpush2.bf16.xpose.msra.mxu0 0
    %527 = vmatprep.subr.bf16.mxu0 0
    %528 = vmatpush2.bf16.xpose.msra.mxu0 0
    %529 = vmatprep.subr.bf16.mxu0 0
    %530 = vmatpush2.bf16.xpose.msra.mxu0 0
    %531 = vmatprep.subr.bf16.mxu0 0
    %532 = vmatpush2.bf16.xpose.msra.mxu0 0
    %533 = vmatprep.mubr.bf16.mxu0 0
    %534 = vmatmul.mubr.bf16.gmra.mxu0 %v496
    %v535 = vpop.f32.mrf.mxu0
    %v536 = vadd.f32 0.0, %v535
    %v537 = vpop.f32.mrf.mxu0
    %v538 = vpop.f32.mrf.mxu0
    %v539 = vpop.f32.mrf.mxu0
    %540 = vdwg.mxu0
    %542 = vrot.lane.b32.xlu0 %v196, 96
    %v543 = vpop.permute.xlu0 %542
    %v545 = vsel %vm200, %v196, 0
    %v548 = vsel %vm200, %v543, 0
    %550 = vmatprep.subr.bf16.mxu0 0
    %551 = vmatpush1.bf16.xpose.msra.mxu0 0
    %552 = vmatprep.subr.bf16.mxu0 0
    %553 = vmatpush1.bf16.xpose.msra.mxu0 0
    %554 = vmatprep.subr.bf16.mxu0 0
    %555 = vmatpush1.bf16.xpose.msra.mxu0 0
    %556 = vmatprep.subr.bf16.mxu0 0
    %557 = vmatpush1.bf16.xpose.msra.mxu0 0
    %558 = vmatprep.subr.bf16.mxu0 0
    %559 = vmatpush1.bf16.xpose.msra.mxu0 0
    %560 = vmatprep.subr.bf16.mxu0 0
    %561 = vmatpush1.bf16.xpose.msra.mxu0 0
    %562 = vmatprep.subr.bf16.mxu0 0
    %563 = vmatpush1.bf16.xpose.msra.mxu0 0
    %564 = vmatprep.subr.bf16.mxu0 0
    %565 = vmatpush1.bf16.xpose.msra.mxu0 %v548
    %566 = vmatprep.subr.bf16.mxu0 0
    %567 = vmatpush2.bf16.xpose.msra.mxu0 0
    %568 = vmatprep.subr.bf16.mxu0 0
    %569 = vmatpush2.bf16.xpose.msra.mxu0 0
    %570 = vmatprep.subr.bf16.mxu0 0
    %571 = vmatpush2.bf16.xpose.msra.mxu0 0
    %572 = vmatprep.subr.bf16.mxu0 0
    %573 = vmatpush2.bf16.xpose.msra.mxu0 0
    %574 = vmatprep.subr.bf16.mxu0 0
    %575 = vmatpush2.bf16.xpose.msra.mxu0 0
    %576 = vmatprep.subr.bf16.mxu0 0
    %577 = vmatpush2.bf16.xpose.msra.mxu0 0
    %578 = vmatprep.subr.bf16.mxu0 0
    %579 = vmatpush2.bf16.xpose.msra.mxu0 0
    %580 = vmatprep.subr.bf16.mxu0 0
    %581 = vmatpush2.bf16.xpose.msra.mxu0 0
    %582 = vmatprep.mubr.bf16.mxu0 0
    %583 = vmatmul.mubr.bf16.gmra.mxu0 %v545
    %v584 = vpop.f32.mrf.mxu0
    %v585 = vadd.f32 0.0, %v584
    %v586 = vpop.f32.mrf.mxu0
    %v587 = vpop.f32.mrf.mxu0
    %v588 = vpop.f32.mrf.mxu0
    %589 = vdwg.mxu0
    %v590 = vsel %vm200, %v242, -inf
    %591 = vmax.xlane.f32.xlu0 %v590
    %v592 = vpop.xlane.xlu0 %591
    %v593 = vsel %vm200, %v291, -inf
    %594 = vmax.xlane.f32.xlu0 %v593
    %v595 = vpop.xlane.xlu0 %594
    %v596 = vsel %vm200, %v340, -inf
    %597 = vmax.xlane.f32.xlu0 %v596
    %v598 = vpop.xlane.xlu0 %597
    %v599 = vsel %vm200, %v389, -inf
    %600 = vmax.xlane.f32.xlu0 %v599
    %v601 = vpop.xlane.xlu0 %600
    %v602 = vsel %vm200, %v438, -inf
    %603 = vmax.xlane.f32.xlu0 %v602
    %v604 = vpop.xlane.xlu0 %603
    %v605 = vsel %vm200, %v487, -inf
    %606 = vmax.xlane.f32.xlu0 %v605
    %v607 = vpop.xlane.xlu0 %606
    %v608 = vsel %vm200, %v536, -inf
    %609 = vmax.xlane.f32.xlu0 %v608
    %v610 = vpop.xlane.xlu0 %609
    %v611 = vsel %vm200, %v585, -inf
    %612 = vmax.xlane.f32.xlu0 %v611
    %v613 = vpop.xlane.xlu0 %612
    %v614 = vsub.f32 %v242, %v592
    %v615 = vsub.f32 %v291, %v595
    %v616 = vsub.f32 %v340, %v598
    %v617 = vsub.f32 %v389, %v601
    %v618 = vsub.f32 %v438, %v604
    %v619 = vsub.f32 %v487, %v607
    %v620 = vsub.f32 %v536, %v610
    %v621 = vsub.f32 %v585, %v613
    %v622 = vmul.f32 %v614, 1.442695
    %v623 = vpow.pop %v622
    %v624 = vmul.f32 %v615, 1.442695
    %v625 = vpow.pop %v624
    %v626 = vmul.f32 %v616, 1.442695
    %v627 = vpow.pop %v626
    %v628 = vmul.f32 %v617, 1.442695
    %v629 = vpow.pop %v628
    %v630 = vmul.f32 %v618, 1.442695
    %v631 = vpow.pop %v630
    %v632 = vmul.f32 %v619, 1.442695
    %v633 = vpow.pop %v632
    %v634 = vmul.f32 %v620, 1.442695
    %v635 = vpow.pop %v634
    %v636 = vmul.f32 %v621, 1.442695
    %v637 = vpow.pop %v636
    %v638 = vsel %vm200, %v623, 0.0
    %639 = vadd.xlane.f32.xlu0 %v638
    %v640 = vpop.xlane.xlu0 %639
    %v641 = vsel %vm200, %v625, 0.0
    %642 = vadd.xlane.f32.xlu0 %v641
    %v643 = vpop.xlane.xlu0 %642
    %v644 = vsel %vm200, %v627, 0.0
    %645 = vadd.xlane.f32.xlu0 %v644
    %v646 = vpop.xlane.xlu0 %645
    %v647 = vsel %vm200, %v629, 0.0
    %648 = vadd.xlane.f32.xlu0 %v647
    %v649 = vpop.xlane.xlu0 %648
    %v650 = vsel %vm200, %v631, 0.0
    %651 = vadd.xlane.f32.xlu0 %v650
    %v652 = vpop.xlane.xlu0 %651
    %v653 = vsel %vm200, %v633, 0.0
    %654 = vadd.xlane.f32.xlu0 %v653
    %v655 = vpop.xlane.xlu0 %654
    %v656 = vsel %vm200, %v635, 0.0
    %657 = vadd.xlane.f32.xlu0 %v656
    %v658 = vpop.xlane.xlu0 %657
    %v659 = vsel %vm200, %v637, 0.0
    %660 = vadd.xlane.f32.xlu0 %v659
    %v661 = vpop.xlane.xlu0 %660
    %v662 = vrcp.pop %v640
    %v663 = vmul.f32 %v623, %v662
    %v664 = vrcp.pop %v643
    %v665 = vmul.f32 %v625, %v664
    %v666 = vrcp.pop %v646
    %v667 = vmul.f32 %v627, %v666
    %v668 = vrcp.pop %v649
    %v669 = vmul.f32 %v629, %v668
    %v670 = vrcp.pop %v652
    %v671 = vmul.f32 %v631, %v670
    %v672 = vrcp.pop %v655
    %v673 = vmul.f32 %v633, %v672
    %v674 = vrcp.pop %v658
    %v675 = vmul.f32 %v635, %v674
    %v676 = vrcp.pop %v661
    %v677 = vmul.f32 %v637, %v676
    %v678 = vpack.c.bf16 %v663, %v663
    %v679 = vpack.c.bf16 %v665, %v665
    %v680 = vpack.c.bf16 %v667, %v667
    %v681 = vpack.c.bf16 %v669, %v669
    %v682 = vpack.c.bf16 %v671, %v671
    %v683 = vpack.c.bf16 %v673, %v673
    %v684 = vpack.c.bf16 %v675, %v675
    %v685 = vpack.c.bf16 %v677, %v677
    %686 = vrot.lane.b32.xlu0 %v189, 64
    %v687 = vpop.permute.xlu0 %686
    %v689 = vsel %vm200, %v678, 0
    %vm691 = vcmask 1043456
    %v693 = vsel %vm691, %v687, 0
    %695 = vmatprep.subr.bf16.mxu0 0
    %696 = vmatpush1.bf16.msra.mxu0 0
    %697 = vmatprep.subr.bf16.mxu0 0
    %698 = vmatpush1.bf16.msra.mxu0 0
    %699 = vmatprep.subr.bf16.mxu0 0
    %700 = vmatpush1.bf16.msra.mxu0 0
    %701 = vmatprep.subr.bf16.mxu0 0
    %702 = vmatpush1.bf16.msra.mxu0 0
    %703 = vmatprep.subr.bf16.mxu0 0
    %704 = vmatpush1.bf16.msra.mxu0 0
    %705 = vmatprep.subr.bf16.mxu0 0
    %706 = vmatpush1.bf16.msra.mxu0 0
    %707 = vmatprep.subr.bf16.mxu0 0
    %708 = vmatpush1.bf16.msra.mxu0 0
    %709 = vmatprep.subr.bf16.mxu0 0
    %710 = vmatpush1.bf16.msra.mxu0 %v693
    %711 = vmatprep.subr.bf16.mxu0 0
    %712 = vmatpush2.bf16.msra.mxu0 0
    %713 = vmatprep.subr.bf16.mxu0 0
    %714 = vmatpush2.bf16.msra.mxu0 0
    %715 = vmatprep.subr.bf16.mxu0 0
    %716 = vmatpush2.bf16.msra.mxu0 0
    %717 = vmatprep.subr.bf16.mxu0 0
    %718 = vmatpush2.bf16.msra.mxu0 0
    %719 = vmatprep.subr.bf16.mxu0 0
    %720 = vmatpush2.bf16.msra.mxu0 0
    %721 = vmatprep.subr.bf16.mxu0 0
    %722 = vmatpush2.bf16.msra.mxu0 0
    %723 = vmatprep.subr.bf16.mxu0 0
    %724 = vmatpush2.bf16.msra.mxu0 0
    %725 = vmatprep.subr.bf16.mxu0 0
    %726 = vmatpush2.bf16.msra.mxu0 0
    %727 = vmatprep.mubr.bf16.mxu0 0
    %728 = vmatmul.mubr.bf16.gmra.mxu0 %v689
    %v729 = vpop.f32.mrf.mxu0
    %v730 = vadd.f32 0.0, %v729
    %v731 = vpop.f32.mrf.mxu0
    %v732 = vpop.f32.mrf.mxu0
    %v733 = vpop.f32.mrf.mxu0
    %734 = vdwg.mxu0
    %735 = vrot.lane.b32.xlu0 %v190, 64
    %v736 = vpop.permute.xlu0 %735
    %v738 = vsel %vm200, %v679, 0
    %v741 = vsel %vm691, %v736, 0
    %743 = vmatprep.subr.bf16.mxu0 0
    %744 = vmatpush1.bf16.msra.mxu0 0
    %745 = vmatprep.subr.bf16.mxu0 0
    %746 = vmatpush1.bf16.msra.mxu0 0
    %747 = vmatprep.subr.bf16.mxu0 0
    %748 = vmatpush1.bf16.msra.mxu0 0
    %749 = vmatprep.subr.bf16.mxu0 0
    %750 = vmatpush1.bf16.msra.mxu0 0
    %751 = vmatprep.subr.bf16.mxu0 0
    %752 = vmatpush1.bf16.msra.mxu0 0
    %753 = vmatprep.subr.bf16.mxu0 0
    %754 = vmatpush1.bf16.msra.mxu0 0
    %755 = vmatprep.subr.bf16.mxu0 0
    %756 = vmatpush1.bf16.msra.mxu0 0
    %757 = vmatprep.subr.bf16.mxu0 0
    %758 = vmatpush1.bf16.msra.mxu0 %v741
    %759 = vmatprep.subr.bf16.mxu0 0
    %760 = vmatpush2.bf16.msra.mxu0 0
    %761 = vmatprep.subr.bf16.mxu0 0
    %762 = vmatpush2.bf16.msra.mxu0 0
    %763 = vmatprep.subr.bf16.mxu0 0
    %764 = vmatpush2.bf16.msra.mxu0 0
    %765 = vmatprep.subr.bf16.mxu0 0
    %766 = vmatpush2.bf16.msra.mxu0 0
    %767 = vmatprep.subr.bf16.mxu0 0
    %768 = vmatpush2.bf16.msra.mxu0 0
    %769 = vmatprep.subr.bf16.mxu0 0
    %770 = vmatpush2.bf16.msra.mxu0 0
    %771 = vmatprep.subr.bf16.mxu0 0
    %772 = vmatpush2.bf16.msra.mxu0 0
    %773 = vmatprep.subr.bf16.mxu0 0
    %774 = vmatpush2.bf16.msra.mxu0 0
    %775 = vmatprep.mubr.bf16.mxu0 0
    %776 = vmatmul.mubr.bf16.gmra.mxu0 %v738
    %v777 = vpop.f32.mrf.mxu0
    %v778 = vadd.f32 0.0, %v777
    %v779 = vpop.f32.mrf.mxu0
    %v780 = vpop.f32.mrf.mxu0
    %v781 = vpop.f32.mrf.mxu0
    %782 = vdwg.mxu0
    %783 = vrot.lane.b32.xlu0 %v191, 64
    %v784 = vpop.permute.xlu0 %783
    %v786 = vsel %vm200, %v680, 0
    %v789 = vsel %vm691, %v784, 0
    %791 = vmatprep.subr.bf16.mxu0 0
    %792 = vmatpush1.bf16.msra.mxu0 0
    %793 = vmatprep.subr.bf16.mxu0 0
    %794 = vmatpush1.bf16.msra.mxu0 0
    %795 = vmatprep.subr.bf16.mxu0 0
    %796 = vmatpush1.bf16.msra.mxu0 0
    %797 = vmatprep.subr.bf16.mxu0 0
    %798 = vmatpush1.bf16.msra.mxu0 0
    %799 = vmatprep.subr.bf16.mxu0 0
    %800 = vmatpush1.bf16.msra.mxu0 0
    %801 = vmatprep.subr.bf16.mxu0 0
    %802 = vmatpush1.bf16.msra.mxu0 0
    %803 = vmatprep.subr.bf16.mxu0 0
    %804 = vmatpush1.bf16.msra.mxu0 0
    %805 = vmatprep.subr.bf16.mxu0 0
    %806 = vmatpush1.bf16.msra.mxu0 %v789
    %807 = vmatprep.subr.bf16.mxu0 0
    %808 = vmatpush2.bf16.msra.mxu0 0
    %809 = vmatprep.subr.bf16.mxu0 0
    %810 = vmatpush2.bf16.msra.mxu0 0
    %811 = vmatprep.subr.bf16.mxu0 0
    %812 = vmatpush2.bf16.msra.mxu0 0
    %813 = vmatprep.subr.bf16.mxu0 0
    %814 = vmatpush2.bf16.msra.mxu0 0
    %815 = vmatprep.subr.bf16.mxu0 0
    %816 = vmatpush2.bf16.msra.mxu0 0
    %817 = vmatprep.subr.bf16.mxu0 0
    %818 = vmatpush2.bf16.msra.mxu0 0
    %819 = vmatprep.subr.bf16.mxu0 0
    %820 = vmatpush2.bf16.msra.mxu0 0
    %821 = vmatprep.subr.bf16.mxu0 0
    %822 = vmatpush2.bf16.msra.mxu0 0
    %823 = vmatprep.mubr.bf16.mxu0 0
    %824 = vmatmul.mubr.bf16.gmra.mxu0 %v786
    %v825 = vpop.f32.mrf.mxu0
    %v826 = vadd.f32 0.0, %v825
    %v827 = vpop.f32.mrf.mxu0
    %v828 = vpop.f32.mrf.mxu0
    %v829 = vpop.f32.mrf.mxu0
    %830 = vdwg.mxu0
    %831 = vrot.lane.b32.xlu0 %v192, 64
    %v832 = vpop.permute.xlu0 %831
    %v834 = vsel %vm200, %v681, 0
    %v837 = vsel %vm691, %v832, 0
    %839 = vmatprep.subr.bf16.mxu0 0
    %840 = vmatpush1.bf16.msra.mxu0 0
    %841 = vmatprep.subr.bf16.mxu0 0
    %842 = vmatpush1.bf16.msra.mxu0 0
    %843 = vmatprep.subr.bf16.mxu0 0
    %844 = vmatpush1.bf16.msra.mxu0 0
    %845 = vmatprep.subr.bf16.mxu0 0
    %846 = vmatpush1.bf16.msra.mxu0 0
    %847 = vmatprep.subr.bf16.mxu0 0
    %848 = vmatpush1.bf16.msra.mxu0 0
    %849 = vmatprep.subr.bf16.mxu0 0
    %850 = vmatpush1.bf16.msra.mxu0 0
    %851 = vmatprep.subr.bf16.mxu0 0
    %852 = vmatpush1.bf16.msra.mxu0 0
    %853 = vmatprep.subr.bf16.mxu0 0
    %854 = vmatpush1.bf16.msra.mxu0 %v837
    %855 = vmatprep.subr.bf16.mxu0 0
    %856 = vmatpush2.bf16.msra.mxu0 0
    %857 = vmatprep.subr.bf16.mxu0 0
    %858 = vmatpush2.bf16.msra.mxu0 0
    %859 = vmatprep.subr.bf16.mxu0 0
    %860 = vmatpush2.bf16.msra.mxu0 0
    %861 = vmatprep.subr.bf16.mxu0 0
    %862 = vmatpush2.bf16.msra.mxu0 0
    %863 = vmatprep.subr.bf16.mxu0 0
    %864 = vmatpush2.bf16.msra.mxu0 0
    %865 = vmatprep.subr.bf16.mxu0 0
    %866 = vmatpush2.bf16.msra.mxu0 0
    %867 = vmatprep.subr.bf16.mxu0 0
    %868 = vmatpush2.bf16.msra.mxu0 0
    %869 = vmatprep.subr.bf16.mxu0 0
    %870 = vmatpush2.bf16.msra.mxu0 0
    %871 = vmatprep.mubr.bf16.mxu0 0
    %872 = vmatmul.mubr.bf16.gmra.mxu0 %v834
    %v873 = vpop.f32.mrf.mxu0
    %v874 = vadd.f32 0.0, %v873
    %v875 = vpop.f32.mrf.mxu0
    %v876 = vpop.f32.mrf.mxu0
    %v877 = vpop.f32.mrf.mxu0
    %878 = vdwg.mxu0
    %879 = vrot.lane.b32.xlu0 %v193, 64
    %v880 = vpop.permute.xlu0 %879
    %v882 = vsel %vm200, %v682, 0
    %v885 = vsel %vm691, %v880, 0
    %887 = vmatprep.subr.bf16.mxu0 0
    %888 = vmatpush1.bf16.msra.mxu0 0
    %889 = vmatprep.subr.bf16.mxu0 0
    %890 = vmatpush1.bf16.msra.mxu0 0
    %891 = vmatprep.subr.bf16.mxu0 0
    %892 = vmatpush1.bf16.msra.mxu0 0
    %893 = vmatprep.subr.bf16.mxu0 0
    %894 = vmatpush1.bf16.msra.mxu0 0
    %895 = vmatprep.subr.bf16.mxu0 0
    %896 = vmatpush1.bf16.msra.mxu0 0
    %897 = vmatprep.subr.bf16.mxu0 0
    %898 = vmatpush1.bf16.msra.mxu0 0
    %899 = vmatprep.subr.bf16.mxu0 0
    %900 = vmatpush1.bf16.msra.mxu0 0
    %901 = vmatprep.subr.bf16.mxu0 0
    %902 = vmatpush1.bf16.msra.mxu0 %v885
    %903 = vmatprep.subr.bf16.mxu0 0
    %904 = vmatpush2.bf16.msra.mxu0 0
    %905 = vmatprep.subr.bf16.mxu0 0
    %906 = vmatpush2.bf16.msra.mxu0 0
    %907 = vmatprep.subr.bf16.mxu0 0
    %908 = vmatpush2.bf16.msra.mxu0 0
    %909 = vmatprep.subr.bf16.mxu0 0
    %910 = vmatpush2.bf16.msra.mxu0 0
    %911 = vmatprep.subr.bf16.mxu0 0
    %912 = vmatpush2.bf16.msra.mxu0 0
    %913 = vmatprep.subr.bf16.mxu0 0
    %914 = vmatpush2.bf16.msra.mxu0 0
    %915 = vmatprep.subr.bf16.mxu0 0
    %916 = vmatpush2.bf16.msra.mxu0 0
    %917 = vmatprep.subr.bf16.mxu0 0
    %918 = vmatpush2.bf16.msra.mxu0 0
    %919 = vmatprep.mubr.bf16.mxu0 0
    %920 = vmatmul.mubr.bf16.gmra.mxu0 %v882
    %v921 = vpop.f32.mrf.mxu0
    %v922 = vadd.f32 0.0, %v921
    %v923 = vpop.f32.mrf.mxu0
    %v924 = vpop.f32.mrf.mxu0
    %v925 = vpop.f32.mrf.mxu0
    %926 = vdwg.mxu0
    %927 = vrot.lane.b32.xlu0 %v194, 64
    %v928 = vpop.permute.xlu0 %927
    %v930 = vsel %vm200, %v683, 0
    %v933 = vsel %vm691, %v928, 0
    %935 = vmatprep.subr.bf16.mxu0 0
    %936 = vmatpush1.bf16.msra.mxu0 0
    %937 = vmatprep.subr.bf16.mxu0 0
    %938 = vmatpush1.bf16.msra.mxu0 0
    %939 = vmatprep.subr.bf16.mxu0 0
    %940 = vmatpush1.bf16.msra.mxu0 0
    %941 = vmatprep.subr.bf16.mxu0 0
    %942 = vmatpush1.bf16.msra.mxu0 0
    %943 = vmatprep.subr.bf16.mxu0 0
    %944 = vmatpush1.bf16.msra.mxu0 0
    %945 = vmatprep.subr.bf16.mxu0 0
    %946 = vmatpush1.bf16.msra.mxu0 0
    %947 = vmatprep.subr.bf16.mxu0 0
    %948 = vmatpush1.bf16.msra.mxu0 0
    %949 = vmatprep.subr.bf16.mxu0 0
    %950 = vmatpush1.bf16.msra.mxu0 %v933
    %951 = vmatprep.subr.bf16.mxu0 0
    %952 = vmatpush2.bf16.msra.mxu0 0
    %953 = vmatprep.subr.bf16.mxu0 0
    %954 = vmatpush2.bf16.msra.mxu0 0
    %955 = vmatprep.subr.bf16.mxu0 0
    %956 = vmatpush2.bf16.msra.mxu0 0
    %957 = vmatprep.subr.bf16.mxu0 0
    %958 = vmatpush2.bf16.msra.mxu0 0
    %959 = vmatprep.subr.bf16.mxu0 0
    %960 = vmatpush2.bf16.msra.mxu0 0
    %961 = vmatprep.subr.bf16.mxu0 0
    %962 = vmatpush2.bf16.msra.mxu0 0
    %963 = vmatprep.subr.bf16.mxu0 0
    %964 = vmatpush2.bf16.msra.mxu0 0
    %965 = vmatprep.subr.bf16.mxu0 0
    %966 = vmatpush2.bf16.msra.mxu0 0
    %967 = vmatprep.mubr.bf16.mxu0 0
    %968 = vmatmul.mubr.bf16.gmra.mxu0 %v930
    %v969 = vpop.f32.mrf.mxu0
    %v970 = vadd.f32 0.0, %v969
    %v971 = vpop.f32.mrf.mxu0
    %v972 = vpop.f32.mrf.mxu0
    %v973 = vpop.f32.mrf.mxu0
    %974 = vdwg.mxu0
    %975 = vrot.lane.b32.xlu0 %v195, 64
    %v976 = vpop.permute.xlu0 %975
    %v978 = vsel %vm200, %v684, 0
    %v981 = vsel %vm691, %v976, 0
    %983 = vmatprep.subr.bf16.mxu0 0
    %984 = vmatpush1.bf16.msra.mxu0 0
    %985 = vmatprep.subr.bf16.mxu0 0
    %986 = vmatpush1.bf16.msra.mxu0 0
    %987 = vmatprep.subr.bf16.mxu0 0
    %988 = vmatpush1.bf16.msra.mxu0 0
    %989 = vmatprep.subr.bf16.mxu0 0
    %990 = vmatpush1.bf16.msra.mxu0 0
    %991 = vmatprep.subr.bf16.mxu0 0
    %992 = vmatpush1.bf16.msra.mxu0 0
    %993 = vmatprep.subr.bf16.mxu0 0
    %994 = vmatpush1.bf16.msra.mxu0 0
    %995 = vmatprep.subr.bf16.mxu0 0
    %996 = vmatpush1.bf16.msra.mxu0 0
    %997 = vmatprep.subr.bf16.mxu0 0
    %998 = vmatpush1.bf16.msra.mxu0 %v981
    %999 = vmatprep.subr.bf16.mxu0 0
    %1000 = vmatpush2.bf16.msra.mxu0 0
    %1001 = vmatprep.subr.bf16.mxu0 0
    %1002 = vmatpush2.bf16.msra.mxu0 0
    %1003 = vmatprep.subr.bf16.mxu0 0
    %1004 = vmatpush2.bf16.msra.mxu0 0
    %1005 = vmatprep.subr.bf16.mxu0 0
    %1006 = vmatpush2.bf16.msra.mxu0 0
    %1007 = vmatprep.subr.bf16.mxu0 0
    %1008 = vmatpush2.bf16.msra.mxu0 0
    %1009 = vmatprep.subr.bf16.mxu0 0
    %1010 = vmatpush2.bf16.msra.mxu0 0
    %1011 = vmatprep.subr.bf16.mxu0 0
    %1012 = vmatpush2.bf16.msra.mxu0 0
    %1013 = vmatprep.subr.bf16.mxu0 0
    %1014 = vmatpush2.bf16.msra.mxu0 0
    %1015 = vmatprep.mubr.bf16.mxu0 0
    %1016 = vmatmul.mubr.bf16.gmra.mxu0 %v978
    %v1017 = vpop.f32.mrf.mxu0
    %v1018 = vadd.f32 0.0, %v1017
    %v1019 = vpop.f32.mrf.mxu0
    %v1020 = vpop.f32.mrf.mxu0
    %v1021 = vpop.f32.mrf.mxu0
    %1022 = vdwg.mxu0
    %1023 = vrot.lane.b32.xlu0 %v196, 64
    %v1024 = vpop.permute.xlu0 %1023
    %v1026 = vsel %vm200, %v685, 0
    %v1029 = vsel %vm691, %v1024, 0
    %1031 = vmatprep.subr.bf16.mxu0 0
    %1032 = vmatpush1.bf16.msra.mxu0 0
    %1033 = vmatprep.subr.bf16.mxu0 0
    %1034 = vmatpush1.bf16.msra.mxu0 0
    %1035 = vmatprep.subr.bf16.mxu0 0
    %1036 = vmatpush1.bf16.msra.mxu0 0
    %1037 = vmatprep.subr.bf16.mxu0 0
    %1038 = vmatpush1.bf16.msra.mxu0 0
    %1039 = vmatprep.subr.bf16.mxu0 0
    %1040 = vmatpush1.bf16.msra.mxu0 0
    %1041 = vmatprep.subr.bf16.mxu0 0
    %1042 = vmatpush1.bf16.msra.mxu0 0
    %1043 = vmatprep.subr.bf16.mxu0 0
    %1044 = vmatpush1.bf16.msra.mxu0 0
    %1045 = vmatprep.subr.bf16.mxu0 0
    %1046 = vmatpush1.bf16.msra.mxu0 %v1029
    %1047 = vmatprep.subr.bf16.mxu0 0
    %1048 = vmatpush2.bf16.msra.mxu0 0
    %1049 = vmatprep.subr.bf16.mxu0 0
    %1050 = vmatpush2.bf16.msra.mxu0 0
    %1051 = vmatprep.subr.bf16.mxu0 0
    %1052 = vmatpush2.bf16.msra.mxu0 0
    %1053 = vmatprep.subr.bf16.mxu0 0
    %1054 = vmatpush2.bf16.msra.mxu0 0
    %1055 = vmatprep.subr.bf16.mxu0 0
    %1056 = vmatpush2.bf16.msra.mxu0 0
    %1057 = vmatprep.subr.bf16.mxu0 0
    %1058 = vmatpush2.bf16.msra.mxu0 0
    %1059 = vmatprep.subr.bf16.mxu0 0
    %1060 = vmatpush2.bf16.msra.mxu0 0
    %1061 = vmatprep.subr.bf16.mxu0 0
    %1062 = vmatpush2.bf16.msra.mxu0 0
    %1063 = vmatprep.mubr.bf16.mxu0 0
    %1064 = vmatmul.mubr.bf16.gmra.mxu0 %v1026
    %v1065 = vpop.f32.mrf.mxu0
    %v1066 = vadd.f32 0.0, %v1065
    %v1067 = vpop.f32.mrf.mxu0
    %v1068 = vpop.f32.mrf.mxu0
    %v1069 = vpop.f32.mrf.mxu0
    %1070 = vdwg.mxu0
    %1073 = vrot.lane.b32.xlu0 %v826, 8
    %v1074 = vpop.permute.xlu0 %1073
    %1075 = vrot.lane.b32.xlu0 %v874, 8
    %v1076 = vpop.permute.xlu0 %1075
    %1081 = vrot.lane.b32.xlu0 %v922, 16
    %v1082 = vpop.permute.xlu0 %1081
    %1083 = vrot.lane.b32.xlu0 %v970, 16
    %v1084 = vpop.permute.xlu0 %1083
    %1089 = vrot.lane.b32.xlu0 %v1018, 24
    %v1090 = vpop.permute.xlu0 %1089
    %1091 = vrot.lane.b32.xlu0 %v1066, 24
    %v1092 = vpop.permute.xlu0 %1091
    %v1095 = vsel %vm200, %v730, %v1074
    %v1096 = vsel %vm200, %v778, %v1076
    %vm1097 = vcmask 130048
    %v1098 = vsel %vm1097, %v1095, %v1082
    %v1099 = vsel %vm1097, %v1096, %v1084
    %vm1100 = vcmask 195584
    %v1101 = vsel %vm1100, %v1098, %v1090
    %v1102 = vsel %vm1100, %v1099, %v1092
    %v1103 = vpack.c.bf16 %v1102, %v1101
    %v1104 = vlaneseq
    %v1105 = vshrl.u32 %v1104, 7
    %v1106 = vsub.s32 1, %v1105
    %v1107 = vrot.slane %v72, %v1106
    %v1112 = vunpack.c.l.b16 %v79
    %v1113 = vunpack.c.l.b16 %v80
    %v1114 = vunpack.c.l.b16 %v81
    %v1115 = vunpack.c.l.b16 %v82
    %v1116 = vpack.c.b16 %v1113, %v1112
    %v1117 = vpack.c.b16 %v1115, %v1114
    %v1121 = vsel %vm124, %v1103, 0
    %1123 = vmatprep.subr.bf16.mxu0 0
    %1124 = vmatpush1.bf16.msra.mxu0 0
    %1125 = vmatprep.subr.bf16.mxu0 0
    %1126 = vmatpush1.bf16.msra.mxu0 0
    %1127 = vmatprep.subr.bf16.mxu0 0
    %1128 = vmatpush1.bf16.msra.mxu0 0
    %1129 = vmatprep.subr.bf16.mxu0 0
    %1130 = vmatpush1.bf16.msra.mxu0 0
    %1131 = vmatprep.subr.bf16.mxu0 0
    %1132 = vmatpush1.bf16.msra.mxu0 0
    %1133 = vmatprep.subr.bf16.mxu0 0
    %1134 = vmatpush1.bf16.msra.mxu0 0
    %1135 = vmatprep.subr.bf16.mxu0 0
    %1136 = vmatpush1.bf16.msra.mxu0 %v1117
    %1137 = vmatprep.subr.bf16.mxu0 0
    %1138 = vmatpush1.bf16.msra.mxu0 %v1116
    %1139 = vmatprep.subr.bf16.mxu0 0
    %1140 = vmatpush2.bf16.msra.mxu0 0
    %1141 = vmatprep.subr.bf16.mxu0 0
    %1142 = vmatpush2.bf16.msra.mxu0 0
    %1143 = vmatprep.subr.bf16.mxu0 0
    %1144 = vmatpush2.bf16.msra.mxu0 0
    %1145 = vmatprep.subr.bf16.mxu0 0
    %1146 = vmatpush2.bf16.msra.mxu0 0
    %1147 = vmatprep.subr.bf16.mxu0 0
    %1148 = vmatpush2.bf16.msra.mxu0 0
    %1149 = vmatprep.subr.bf16.mxu0 0
    %1150 = vmatpush2.bf16.msra.mxu0 0
    %1151 = vmatprep.subr.bf16.mxu0 0
    %1152 = vmatpush2.bf16.msra.mxu0 0
    %1153 = vmatprep.subr.bf16.mxu0 0
    %1154 = vmatpush2.bf16.msra.mxu0 0
    %1155 = vmatprep.mubr.bf16.mxu0 0
    %1156 = vmatmul.mubr.bf16.gmra.mxu0 %v1121
    %v1157 = vpop.f32.mrf.mxu0
    %v1158 = vadd.f32 %v1107, %v1157
    %v1159 = vpop.f32.mrf.mxu0
    %v1160 = vpop.f32.mrf.mxu0
    %v1161 = vadd.f32 %v1107, %v1160
    %v1162 = vpop.f32.mrf.mxu0
    %1163 = vdwg.mxu0
    %v1164 = vadd.f32 %v105, %v1158
    %v1165 = vadd.f32 %v106, %v1161
    %v1166 = vsel %vm124, %v1164, 0.0
    %1167 = vadd.xlane.f32.xlu0 %v1166
    %v1168 = vpop.xlane.xlu0 %1167
    %v1169 = vsel %vm124, %v1165, 0.0
    %1170 = vadd.xlane.f32.xlu0 %v1169
    %v1171 = vpop.xlane.xlu0 %1170
    %v1172 = vrcp.pop 32.0
    %v1173 = vmul.f32 %v1168, %v1172
    %v1174 = vmul.f32 %v1171, %v1172
    %v1175 = vsub.f32 %v1164, %v1173
    %v1176 = vsub.f32 %v1165, %v1174
    %v1177 = vmul.f32 %v1175, %v1175
    %v1178 = vmul.f32 %v1176, %v1176
    %v1179 = vsel %vm124, %v1177, 0.0
    %1180 = vadd.xlane.f32.xlu0 %v1179
    %v1181 = vpop.xlane.xlu0 %1180
    %v1182 = vsel %vm124, %v1178, 0.0
    %1183 = vadd.xlane.f32.xlu0 %v1182
    %v1184 = vpop.xlane.xlu0 %1183
    %v1185 = vmul.f32 %v1181, %v1172
    %v1186 = vmul.f32 %v1184, %v1172
    %v1187 = vadd.f32 %v1185, 1e-05
    %v1188 = vadd.f32 %v1186, 1e-05
    %v1189 = vrsqrt.pop %v1187
    %v1190 = vrsqrt.pop %v1188
    %v1191 = vmul.f32 %v1175, %v1189
    %v1192 = vmul.f32 %v1176, %v1190
    %v1193 = vlaneseq
    %v1194 = vshrl.u32 %v1193, 7
    %v1195 = vsub.s32 2, %v1194
    %v1196 = vrot.slane %v72, %v1195
    %v1197 = vmul.f32 %v1191, %v1196
    %v1198 = vmul.f32 %v1192, %v1196
    %v1199 = vlaneseq
    %v1200 = vshrl.u32 %v1199, 7
    %v1201 = vsub.s32 3, %v1200
    %v1202 = vrot.slane %v72, %v1201
    %v1203 = vadd.f32 %v1197, %v1202
    %v1204 = vadd.f32 %v1198, %v1202
    %v1205 = vpack.c.bf16 %v1204, %v1203
    %v1206 = vlaneseq
    %v1207 = vshrl.u32 %v1206, 7
    %v1208 = vsub.s32 4, %v1207
    %v1209 = vrot.slane %v72, %v1208
    %v1214 = vunpack.c.l.b16 %v84
    %v1215 = vunpack.c.l.b16 %v85
    %v1216 = vunpack.c.l.b16 %v86
    %v1217 = vunpack.c.l.b16 %v87
    %v1218 = vpack.c.b16 %v1215, %v1214
    %v1219 = vpack.c.b16 %v1217, %v1216
    %v1223 = vsel %vm124, %v1205, 0
    %1225 = vmatprep.subr.bf16.mxu0 0
    %1226 = vmatpush1.bf16.msra.mxu0 0
    %1227 = vmatprep.subr.bf16.mxu0 0
    %1228 = vmatpush1.bf16.msra.mxu0 0
    %1229 = vmatprep.subr.bf16.mxu0 0
    %1230 = vmatpush1.bf16.msra.mxu0 0
    %1231 = vmatprep.subr.bf16.mxu0 0
    %1232 = vmatpush1.bf16.msra.mxu0 0
    %1233 = vmatprep.subr.bf16.mxu0 0
    %1234 = vmatpush1.bf16.msra.mxu0 0
    %1235 = vmatprep.subr.bf16.mxu0 0
    %1236 = vmatpush1.bf16.msra.mxu0 0
    %1237 = vmatprep.subr.bf16.mxu0 0
    %1238 = vmatpush1.bf16.msra.mxu0 %v1219
    %1239 = vmatprep.subr.bf16.mxu0 0
    %1240 = vmatpush1.bf16.msra.mxu0 %v1218
    %1241 = vmatprep.subr.bf16.mxu0 0
    %1242 = vmatpush2.bf16.msra.mxu0 0
    %1243 = vmatprep.subr.bf16.mxu0 0
    %1244 = vmatpush2.bf16.msra.mxu0 0
    %1245 = vmatprep.subr.bf16.mxu0 0
    %1246 = vmatpush2.bf16.msra.mxu0 0
    %1247 = vmatprep.subr.bf16.mxu0 0
    %1248 = vmatpush2.bf16.msra.mxu0 0
    %1249 = vmatprep.subr.bf16.mxu0 0
    %1250 = vmatpush2.bf16.msra.mxu0 0
    %1251 = vmatprep.subr.bf16.mxu0 0
    %1252 = vmatpush2.bf16.msra.mxu0 0
    %1253 = vmatprep.subr.bf16.mxu0 0
    %1254 = vmatpush2.bf16.msra.mxu0 0
    %1255 = vmatprep.subr.bf16.mxu0 0
    %1256 = vmatpush2.bf16.msra.mxu0 0
    %1257 = vmatprep.mubr.bf16.mxu0 0
    %1258 = vmatmul.mubr.bf16.gmra.mxu0 %v1223
    %v1259 = vpop.f32.mrf.mxu0
    %v1260 = vadd.f32 %v1209, %v1259
    %v1261 = vpop.f32.mrf.mxu0
    %v1262 = vpop.f32.mrf.mxu0
    %v1263 = vadd.f32 %v1209, %v1262
    %v1264 = vpop.f32.mrf.mxu0
    %1265 = vdwg.mxu0
    %v1266 = vmax.f32 %v1260, 0.0
    %v1267 = vmax.f32 %v1263, 0.0
    %v1268 = vpack.c.bf16 %v1267, %v1266
    %v1269 = vlaneseq
    %v1270 = vshrl.u32 %v1269, 7
    %v1271 = vsub.s32 5, %v1270
    %v1272 = vrot.slane %v72, %v1271
    %v1281 = vunpack.c.l.b16 %v89
    %v1282 = vunpack.c.l.b16 %v90
    %v1283 = vunpack.c.l.b16 %v91
    %v1284 = vunpack.c.l.b16 %v92
    %v1285 = vunpack.c.l.b16 %v93
    %v1286 = vunpack.c.l.b16 %v94
    %v1287 = vunpack.c.l.b16 %v95
    %v1288 = vunpack.c.l.b16 %v96
    %v1289 = vpack.c.b16 %v1282, %v1281
    %v1290 = vpack.c.b16 %v1284, %v1283
    %v1291 = vpack.c.b16 %v1286, %v1285
    %v1292 = vpack.c.b16 %v1288, %v1287
    %vm1297 = vcmask 523264
    %v1299 = vsel %vm1297, %v1268, 0
    %1301 = vmatprep.subr.bf16.mxu0 0
    %1302 = vmatpush1.bf16.msra.mxu0 0
    %1303 = vmatprep.subr.bf16.mxu0 0
    %1304 = vmatpush1.bf16.msra.mxu0 0
    %1305 = vmatprep.subr.bf16.mxu0 0
    %1306 = vmatpush1.bf16.msra.mxu0 0
    %1307 = vmatprep.subr.bf16.mxu0 0
    %1308 = vmatpush1.bf16.msra.mxu0 0
    %1309 = vmatprep.subr.bf16.mxu0 0
    %1310 = vmatpush1.bf16.msra.mxu0 %v1292
    %1311 = vmatprep.subr.bf16.mxu0 0
    %1312 = vmatpush1.bf16.msra.mxu0 %v1291
    %1313 = vmatprep.subr.bf16.mxu0 0
    %1314 = vmatpush1.bf16.msra.mxu0 %v1290
    %1315 = vmatprep.subr.bf16.mxu0 0
    %1316 = vmatpush1.bf16.msra.mxu0 %v1289
    %1317 = vmatprep.subr.bf16.mxu0 0
    %1318 = vmatpush2.bf16.msra.mxu0 0
    %1319 = vmatprep.subr.bf16.mxu0 0
    %1320 = vmatpush2.bf16.msra.mxu0 0
    %1321 = vmatprep.subr.bf16.mxu0 0
    %1322 = vmatpush2.bf16.msra.mxu0 0
    %1323 = vmatprep.subr.bf16.mxu0 0
    %1324 = vmatpush2.bf16.msra.mxu0 0
    %1325 = vmatprep.subr.bf16.mxu0 0
    %1326 = vmatpush2.bf16.msra.mxu0 0
    %1327 = vmatprep.subr.bf16.mxu0 0
    %1328 = vmatpush2.bf16.msra.mxu0 0
    %1329 = vmatprep.subr.bf16.mxu0 0
    %1330 = vmatpush2.bf16.msra.mxu0 0
    %1331 = vmatprep.subr.bf16.mxu0 0
    %1332 = vmatpush2.bf16.msra.mxu0 0
    %1333 = vmatprep.mubr.bf16.mxu0 0
    %1334 = vmatmul.mubr.bf16.gmra.mxu0 %v1299
    %v1335 = vpop.f32.mrf.mxu0
    %v1336 = vadd.f32 %v1272, %v1335
    %v1337 = vpop.f32.mrf.mxu0
    %v1338 = vpop.f32.mrf.mxu0
    %v1339 = vadd.f32 %v1272, %v1338
    %v1340 = vpop.f32.mrf.mxu0
    %1341 = vdwg.mxu0
    %v1342 = vadd.f32 %v1203, %v1336
    %v1343 = vadd.f32 %v1204, %v1339
    %v1344 = vsel %vm124, %v1342, 0.0
    %1345 = vadd.xlane.f32.xlu0 %v1344
    %v1346 = vpop.xlane.xlu0 %1345
    %v1347 = vsel %vm124, %v1343, 0.0
    %1348 = vadd.xlane.f32.xlu0 %v1347
    %v1349 = vpop.xlane.xlu0 %1348
    %v1350 = vmul.f32 %v1346, %v1172
    %v1351 = vmul.f32 %v1349, %v1172
    %v1352 = vsub.f32 %v1342, %v1350
    %v1353 = vsub.f32 %v1343, %v1351
    %v1354 = vmul.f32 %v1352, %v1352
    %v1355 = vmul.f32 %v1353, %v1353
    %v1356 = vsel %vm124, %v1354, 0.0
    %1357 = vadd.xlane.f32.xlu0 %v1356
    %v1358 = vpop.xlane.xlu0 %1357
    %v1359 = vsel %vm124, %v1355, 0.0
    %1360 = vadd.xlane.f32.xlu0 %v1359
    %v1361 = vpop.xlane.xlu0 %1360
    %v1362 = vmul.f32 %v1358, %v1172
    %v1363 = vmul.f32 %v1361, %v1172
    %v1364 = vadd.f32 %v1362, 1e-05
    %v1365 = vadd.f32 %v1363, 1e-05
    %v1366 = vrsqrt.pop %v1364
    %v1367 = vrsqrt.pop %v1365
    %v1368 = vmul.f32 %v1352, %v1366
    %v1369 = vmul.f32 %v1353, %v1367
    %v1370 = vlaneseq
    %v1371 = vshrl.u32 %v1370, 7
    %v1372 = vsub.s32 6, %v1371
    %v1373 = vrot.slane %v72, %v1372
    %v1374 = vmul.f32 %v1368, %v1373
    %v1375 = vmul.f32 %v1369, %v1373
    %v1376 = vlaneseq
    %v1377 = vshrl.u32 %v1376, 7
    %v1378 = vsub.s32 7, %v1377
    %v1379 = vrot.slane %v72, %v1378
    %v1380 = vadd.f32 %v1374, %v1379
    %v1381 = vadd.f32 %v1375, %v1379
    %v1382 = vsel %vm124, %v1380, 0.0
    %v1383 = vrot.slane %v1382, 4
    %v1384 = vadd.f32 %v1382, %v1383
    %v1385 = vrot.slane %v1384, 2
    %v1386 = vadd.f32 %v1384, %v1385
    %v1387 = vrot.slane %v1386, 1
    %v1388 = vadd.f32 %v1386, %v1387
    %v1389 = vsel %vm124, %v1381, 0.0
    %v1390 = vrot.slane %v1389, 4
    %v1391 = vadd.f32 %v1389, %v1390
    %v1392 = vrot.slane %v1391, 2
    %v1393 = vadd.f32 %v1391, %v1392
    %v1394 = vrot.slane %v1393, 1
    %v1395 = vadd.f32 %v1393, %v1394
    %v1396 = vrcp.pop 8.0
    %v1397 = vmul.f32 %v1388, %v1396
    %v1398 = vmul.f32 %v1395, %v1396
    %v1399 = vpack.c.bf16 %v1397, %v1397
    %v1400 = vpack.c.bf16 %v1398, %v1398
    %v1401 = vlaneseq
    %v1402 = vshrl.u32 %v1401, 7
    %v1403 = vsub.s32 0, %v1402
    %v1404 = vrot.slane %v73, %v1403
    %v1407 = vunpack.c.l.b16 %v1399
    %v1408 = vunpack.c.l.b16 %v1400
    %vm1409 = vcmask 1041409
    %v1410 = vsel %vm1409, %v1408, %v1407
    %v1411 = vpack.c.b16 %v1410, %v1410
    %v1416 = vunpack.c.l.b16 %v98
    %v1417 = vunpack.c.l.b16 %v99
    %v1418 = vunpack.c.l.b16 %v100
    %v1419 = vunpack.c.l.b16 %v101
    %v1420 = vpack.c.b16 %v1417, %v1416
    %v1421 = vpack.c.b16 %v1419, %v1418
    %v1425 = vsel %vm124, %v1411, 0
    %1427 = vmatprep.subr.bf16.mxu0 0
    %1428 = vmatpush1.bf16.msra.mxu0 0
    %1429 = vmatprep.subr.bf16.mxu0 0
    %1430 = vmatpush1.bf16.msra.mxu0 0
    %1431 = vmatprep.subr.bf16.mxu0 0
    %1432 = vmatpush1.bf16.msra.mxu0 0
    %1433 = vmatprep.subr.bf16.mxu0 0
    %1434 = vmatpush1.bf16.msra.mxu0 0
    %1435 = vmatprep.subr.bf16.mxu0 0
    %1436 = vmatpush1.bf16.msra.mxu0 0
    %1437 = vmatprep.subr.bf16.mxu0 0
    %1438 = vmatpush1.bf16.msra.mxu0 0
    %1439 = vmatprep.subr.bf16.mxu0 0
    %1440 = vmatpush1.bf16.msra.mxu0 %v1421
    %1441 = vmatprep.subr.bf16.mxu0 0
    %1442 = vmatpush1.bf16.msra.mxu0 %v1420
    %1443 = vmatprep.subr.bf16.mxu0 0
    %1444 = vmatpush2.bf16.msra.mxu0 0
    %1445 = vmatprep.subr.bf16.mxu0 0
    %1446 = vmatpush2.bf16.msra.mxu0 0
    %1447 = vmatprep.subr.bf16.mxu0 0
    %1448 = vmatpush2.bf16.msra.mxu0 0
    %1449 = vmatprep.subr.bf16.mxu0 0
    %1450 = vmatpush2.bf16.msra.mxu0 0
    %1451 = vmatprep.subr.bf16.mxu0 0
    %1452 = vmatpush2.bf16.msra.mxu0 0
    %1453 = vmatprep.subr.bf16.mxu0 0
    %1454 = vmatpush2.bf16.msra.mxu0 0
    %1455 = vmatprep.subr.bf16.mxu0 0
    %1456 = vmatpush2.bf16.msra.mxu0 0
    %1457 = vmatprep.subr.bf16.mxu0 0
    %1458 = vmatpush2.bf16.msra.mxu0 0
    %1459 = vmatprep.mubr.bf16.mxu0 0
    %1460 = vmatmul.mubr.bf16.gmra.mxu0 %v1425
    %v1461 = vpop.f32.mrf.mxu0
    %v1462 = vadd.f32 %v1404, %v1461
    %v1463 = vpop.f32.mrf.mxu0
    %v1464 = vpop.f32.mrf.mxu0
    %v1465 = vpop.f32.mrf.mxu0
    %1466 = vdwg.mxu0
    %1467 = vst [vmem:[#allocation10] sm:$0x3] %v1462
    // Predicated region
    $region34: #{tpu_custom_call.1} parent=1 // pred_check
      _
    $region35: #{tpu_custom_call.1} parent=1 // pred_check_branch
      %1469 = sbr.rel (0) target = $region37
    $region36: #{tpu_custom_call.1} parent=1 // pred_region
      %s1471 = ssub.s32 32, 32
      %1472 = vsyncadd [#allocation4], %s1471
      %s1474 = sshll.u32 [#allocation10], 4
      %s1475 = int_to_ptr.vmem [resolvable:$true] %s1474
      %1477 = dma.vmem_to_hbm [thread:$0]  %s1475, 32, %s4, [#allocation4]
    $region37: #{tpu_custom_call.1} parent=1 // pred_fallthru
      _
    // Predicated region
    $region38: #{tpu_custom_call.1} parent=1 // pred_check
      _
    $region39: #{tpu_custom_call.1} parent=1 // pred_check_branch
      %1479 = sbr.rel (0) target = $region41
    $region40: #{tpu_custom_call.1} parent=1 // pred_region
      %1480 = dma.done [#allocation4], 32
    $region41: #{tpu_custom_call.1} parent=1 // pred_fallthru
      _
    %1481 = vsyncpa [#allocation3], 1
    %1482 = vsyncpa [#allocation6], 1
    %1483 = vsyncpa [#allocation9], 1
    %1484 = vsyncpa [#allocation4], 1

</llo_original>
